<compile_context>
chip_gen: v6e
topology: v6e:2x2x1
jax: 0.10.0
libtpu: 0.0.40
codegen_flags: <defaults>
</compile_context>

<pallas_src>
import jax
import jax.numpy as jnp
from jax.experimental import pallas as pl
from jax.experimental.pallas import tpu as pltpu

FC1 = 256
FC2 = 256


def critic_kernel(xt_ref, w1t_ref, b1_ref, w2t_ref, b2_ref, w3_ref, o_ref):
    # Layer 1: (FC1, D) @ (D, tb) -> (FC1, tb); bf16 operands, f32 accumulation on MXU.
    h1 = jnp.dot(w1t_ref[...], xt_ref[...], preferred_element_type=jnp.float32)
    h1 = jnp.maximum(h1 + b1_ref[...], 0.0)                       # f32 bias + ReLU (VPU)

    # Layer 2: (FC2, FC1) @ (FC1, tb) -> (FC2, tb).
    h2 = jnp.dot(w2t_ref[...], h1.astype(jnp.bfloat16),
                 preferred_element_type=jnp.float32)
    h2 = jnp.maximum(h2 + b2_ref[...], 0.0)

    # Layer 3 (value head, out_features=1): VPU multiply + sublane reduction instead of
    # an N=1 MXU matmul. Result is (1, tb): lane-dense over the batch tile.
    v = jnp.sum(h2 * w3_ref[...], axis=0, keepdims=True)
    o_ref[...] = v.astype(o_ref.dtype)


def critic_forward(state, params, *, batch_tile=256):
    """state: [B, D] float32 -> value: [B, 1] float32."""
    w1, b1, w2, b2, w3, b3 = params
    B, D = state.shape

    # Row tile: multiple of 128 so the (1, tb) output block and (D, tb) input block are
    # lane-aligned. Clamp to round_up(B, 128) so small batches don't pad excessively;
    # pl.cdiv + zero padding handles the remaining tail.
    b_min = ((B + 127) // 128) * 128
    tb = max(128, ((int(batch_tile) + 127) // 128) * 128)
    tb = min(tb, b_min)
    grid_b = pl.cdiv(B, tb)
    b_pad = grid_b * tb

    # Wrapper-side layout plumbing (cheap, one-time):
    #   - batch dim becomes the lane (minor) dim -> lane-dense output stores
    #   - matmul operands cast to bf16 (native MXU), biases stay f32
    xt = jnp.pad(state.astype(jnp.bfloat16).T, ((0, 0), (0, b_pad - B)))   # (D, b_pad)
    w1t = w1.T.astype(jnp.bfloat16)                                         # (FC1, D)
    w2t = w2.T.astype(jnp.bfloat16)                                         # (FC2, FC1)
    b1c = b1.reshape(FC1, 1).astype(jnp.float32)
    b2c = b2.reshape(FC2, 1).astype(jnp.float32)
    w3c = w3.reshape(FC2, 1).astype(jnp.float32)

    flops = int(2 * b_pad * (D * FC1 + FC1 * FC2 + FC2))
    bytes_accessed = int(
        xt.size * 2 + b_pad * 4                      # activations in / values out
        + w1t.size * 2 + w2t.size * 2                # bf16 weights
        + (b1c.size + b2c.size + w3c.size) * 4)      # f32 biases + head

    full = lambda i: (0, 0)  # weights / biases: same whole block every grid step

    out = pl.pallas_call(
        critic_kernel,
        out_shape=jax.ShapeDtypeStruct((1, b_pad), jnp.float32),
        grid_spec=pltpu.PrefetchScalarGridSpec(
            num_scalar_prefetch=0,
            grid=(grid_b,),
            in_specs=[
                pl.BlockSpec((D, tb), lambda i: (0, i)),      # x^T tile (bf16)
                pl.BlockSpec((FC1, D), full),                 # W1^T (bf16)
                pl.BlockSpec((FC1, 1), full),                 # b1   (f32)
                pl.BlockSpec((FC2, FC1), full),               # W2^T (bf16)
                pl.BlockSpec((FC2, 1), full),                 # b2   (f32)
                pl.BlockSpec((FC2, 1), full),                 # w3   (f32)
            ],
            out_specs=pl.BlockSpec((1, tb), lambda i: (0, i)),
        ),
        compiler_params=pltpu.CompilerParams(
            dimension_semantics=("parallel",),
            vmem_limit_bytes=32 * 1024 * 1024),
        cost_estimate=pl.CostEstimate(
            flops=flops, transcendentals=0, bytes_accessed=bytes_accessed),
    )(xt, w1t, b1c, w2t, b2c, w3c)

    # Scalar output bias applied here (cheaper than a padded VMEM tile for one scalar);
    # drop the padded tail rows.
    value = out[0, :B].reshape(B, 1) + b3.reshape(1, 1)
    return value


def init_params(key, input_dim):
    """Deterministic init mimicking PyTorch Linear's U(-1/sqrt(fan_in), 1/sqrt(fan_in))."""
    ks = jax.random.split(key, 6)

    def lin(kw, kb, fan_in, fan_out):
        bound = 1.0 / jnp.sqrt(fan_in)
        w = jax.random.uniform(kw, (fan_in, fan_out), jnp.float32, -bound, bound)
        b = jax.random.uniform(kb, (1, fan_out), jnp.float32, -bound, bound)
        return w, b

    w1, b1 = lin(ks[0], ks[1], input_dim, FC1)
    w2, b2 = lin(ks[2], ks[3], FC1, FC2)
    w3, b3 = lin(ks[4], ks[5], FC2, 1)
    return (w1, b1, w2, b2, w3, b3)


def critic_reference(state, params):
    """Reference with matching numerics: bf16 matmul operands, f32 accumulation,
    f32 elementwise value head."""
    w1, b1, w2, b2, w3, b3 = params
    x = state.astype(jnp.bfloat16)
    h1 = jnp.maximum(
        jnp.dot(x, w1.astype(jnp.bfloat16), preferred_element_type=jnp.float32) + b1, 0.0)
    h2 = jnp.maximum(
        jnp.dot(h1.astype(jnp.bfloat16), w2.astype(jnp.bfloat16),
                preferred_element_type=jnp.float32) + b2, 0.0)
    v = jnp.sum(h2 * w3.reshape(1, FC2), axis=-1, keepdims=True) + b3.reshape(1, 1)
    return v


if __name__ == "__main__":
    key = jax.random.PRNGKey(0)
    k_x, k_p = jax.random.split(key)

    # Small shapes: 300 states of 32 features -> 3 grid steps with a padded tail.
    batch, input_dim = 300, 32
    state = jax.random.normal(k_x, (batch, input_dim), jnp.float32)
    params = init_params(k_p, input_dim)

    value = critic_forward(state, params, batch_tile=128)
    value = jax.block_until_ready(value)

    ref = critic_reference(state, params)
    assert value.shape == (batch, 1)
    assert jnp.allclose(value, ref, atol=1e-3, rtol=1e-3), "mismatch vs JAX reference"

    print("KERNEL_OK")
</pallas_src>

<mosaic_0001>
module attributes {stable_mosaic.version = 11 : i64} {
  func.func @critic_kernel(%arg0: i32, %arg1: memref<32x128xbf16, #tpu.memory_space<vmem>>, %arg2: memref<256x32xbf16, #tpu.memory_space<vmem>>, %arg3: memref<256x1xf32, #tpu.memory_space<vmem>>, %arg4: memref<256x256xbf16, #tpu.memory_space<vmem>>, %arg5: memref<256x1xf32, #tpu.memory_space<vmem>>, %arg6: memref<256x1xf32, #tpu.memory_space<vmem>>, %arg7: memref<1x128xf32, #tpu.memory_space<vmem>>) attributes {dimension_semantics = [#tpu.dimension_semantics<parallel>], iteration_bounds = array<i64: 3>, scalar_prefetch = 0 : i64, scratch_operands = 0 : i64, tpu.core_type = #tpu.core_type<tc>, window_params = [{transform_indices = @transform_0, window_bounds = array<i64: 32, 128>}, {pipeline_mode = #tpu.pipeline_mode<synchronous>, transform_indices = @transform_1, window_bounds = array<i64: 256, 32>}, {pipeline_mode = #tpu.pipeline_mode<synchronous>, transform_indices = @transform_2, window_bounds = array<i64: 256, 1>}, {pipeline_mode = #tpu.pipeline_mode<synchronous>, transform_indices = @transform_3, window_bounds = array<i64: 256, 256>}, {pipeline_mode = #tpu.pipeline_mode<synchronous>, transform_indices = @transform_4, window_bounds = array<i64: 256, 1>}, {pipeline_mode = #tpu.pipeline_mode<synchronous>, transform_indices = @transform_5, window_bounds = array<i64: 256, 1>}, {transform_indices = @transform_6, window_bounds = array<i64: 1, 128>}]} {
    %c0 = arith.constant 0 : index
    %c0_0 = arith.constant 0 : index
    %0 = vector.load %arg2[%c0, %c0_0] : memref<256x32xbf16, #tpu.memory_space<vmem>>, vector<256x32xbf16>
    %c0_1 = arith.constant 0 : index
    %c0_2 = arith.constant 0 : index
    %1 = vector.load %arg1[%c0_1, %c0_2] : memref<32x128xbf16, #tpu.memory_space<vmem>>, vector<32x128xbf16>
    %cst = arith.constant dense<0.000000e+00> : vector<256x128xf32>
    %2 = tpu.matmul %0, %1, %cst {dimension_numbers = #tpu.dot_dimension_numbers<[1], [0], [0], [1], [0, 0, 1, 1], [], []>} : vector<256x32xbf16>, vector<32x128xbf16>, vector<256x128xf32> -> vector<256x128xf32>
    %c0_3 = arith.constant 0 : index
    %c0_4 = arith.constant 0 : index
    %3 = vector.load %arg3[%c0_3, %c0_4] : memref<256x1xf32, #tpu.memory_space<vmem>>, vector<256x1xf32>
    %4 = vector.broadcast %3 : vector<256x1xf32> to vector<256x128xf32>
    %5 = arith.addf %2, %4 : vector<256x128xf32>
    %cst_5 = arith.constant 0.000000e+00 : f32
    %6 = vector.broadcast %cst_5 : f32 to vector<256x128xf32>
    %7 = arith.maximumf %5, %6 : vector<256x128xf32>
    %c0_6 = arith.constant 0 : index
    %c0_7 = arith.constant 0 : index
    %8 = vector.load %arg4[%c0_6, %c0_7] : memref<256x256xbf16, #tpu.memory_space<vmem>>, vector<256x256xbf16>
    %9 = arith.truncf %7 : vector<256x128xf32> to vector<256x128xbf16>
    %cst_8 = arith.constant dense<0.000000e+00> : vector<256x128xf32>
    %10 = tpu.matmul %8, %9, %cst_8 {dimension_numbers = #tpu.dot_dimension_numbers<[1], [0], [0], [1], [0, 0, 1, 1], [], []>} : vector<256x256xbf16>, vector<256x128xbf16>, vector<256x128xf32> -> vector<256x128xf32>
    %c0_9 = arith.constant 0 : index
    %c0_10 = arith.constant 0 : index
    %11 = vector.load %arg5[%c0_9, %c0_10] : memref<256x1xf32, #tpu.memory_space<vmem>>, vector<256x1xf32>
    %12 = vector.broadcast %11 : vector<256x1xf32> to vector<256x128xf32>
    %13 = arith.addf %10, %12 : vector<256x128xf32>
    %cst_11 = arith.constant 0.000000e+00 : f32
    %14 = vector.broadcast %cst_11 : f32 to vector<256x128xf32>
    %15 = arith.maximumf %13, %14 : vector<256x128xf32>
    %c0_12 = arith.constant 0 : index
    %c0_13 = arith.constant 0 : index
    %16 = vector.load %arg6[%c0_12, %c0_13] : memref<256x1xf32, #tpu.memory_space<vmem>>, vector<256x1xf32>
    %17 = vector.broadcast %16 : vector<256x1xf32> to vector<256x128xf32>
    %18 = arith.mulf %15, %17 : vector<256x128xf32>
    %cst_14 = arith.constant dense<0.000000e+00> : vector<128xf32>
    %19 = vector.multi_reduction <add>, %18, %cst_14 [0] : vector<256x128xf32> to vector<128xf32>
    %20 = vector.shape_cast %19 : vector<128xf32> to vector<1x128xf32>
    %c0_15 = arith.constant 0 : index
    %c0_16 = arith.constant 0 : index
    %21 = vector.load %arg7[%c0_15, %c0_16] : memref<1x128xf32, #tpu.memory_space<vmem>>, vector<1x128xf32>
    tpu.vector_store %arg7[%c0_15, %c0_16], %20 {strides = array<i32>} : memref<1x128xf32, #tpu.memory_space<vmem>>, vector<1x128xf32>,
    return
  }
  func.func @transform_0(%arg0: i32) -> (i32, i32) {
    %c0_i32 = arith.constant 0 : i32
    %c0_i32_0 = arith.constant 0 : i32
    return %c0_i32, %arg0 : i32, i32
  }
  func.func @transform_1(%arg0: i32) -> (i32, i32) {
    %c0_i32 = arith.constant 0 : i32
    %c0_i32_0 = arith.constant 0 : i32
    %c0_i32_1 = arith.constant 0 : i32
    return %c0_i32, %c0_i32_0 : i32, i32
  }
  func.func @transform_2(%arg0: i32) -> (i32, i32) {
    %c0_i32 = arith.constant 0 : i32
    %c0_i32_0 = arith.constant 0 : i32
    %c0_i32_1 = arith.constant 0 : i32
    return %c0_i32, %c0_i32_0 : i32, i32
  }
  func.func @transform_3(%arg0: i32) -> (i32, i32) {
    %c0_i32 = arith.constant 0 : i32
    %c0_i32_0 = arith.constant 0 : i32
    %c0_i32_1 = arith.constant 0 : i32
    return %c0_i32, %c0_i32_0 : i32, i32
  }
  func.func @transform_4(%arg0: i32) -> (i32, i32) {
    %c0_i32 = arith.constant 0 : i32
    %c0_i32_0 = arith.constant 0 : i32
    %c0_i32_1 = arith.constant 0 : i32
    return %c0_i32, %c0_i32_0 : i32, i32
  }
  func.func @transform_5(%arg0: i32) -> (i32, i32) {
    %c0_i32 = arith.constant 0 : i32
    %c0_i32_0 = arith.constant 0 : i32
    %c0_i32_1 = arith.constant 0 : i32
    return %c0_i32, %c0_i32_0 : i32, i32
  }
  func.func @transform_6(%arg0: i32) -> (i32, i32) {
    %c0_i32 = arith.constant 0 : i32
    %c0_i32_0 = arith.constant 0 : i32
    return %c0_i32, %arg0 : i32, i32
  }
}

</mosaic_0001>

<llo_original>
// kernel: tpu_custom_call.1
$region0: #{tpu_custom_call.1}
  #allocation0 [shape = 'u32[]', space=smem, size = 0x4, offset = 0x4, fixed_abs, tag = 'smem constant byte address 0x4 - core index']
  #allocation1 [shape = 'u32[144,128]{1,0:T(1,128)}', space=vmem, size = 0x12000, scoped, tag = 'internal scratch']
  %s0 = inlined_call_operand.vmem [shape: bf16[32,384], index: 0, kind: input, shape index: {}]
  %s1 = inlined_call_operand.vmem [shape: bf16[256,32], index: 1, kind: input, shape index: {}]
  %s2 = inlined_call_operand.vmem [shape: f32[256,1], index: 2, kind: input, shape index: {}]
  %s3 = inlined_call_operand.vmem [shape: bf16[256,256], index: 3, kind: input, shape index: {}]
  %s4 = inlined_call_operand.vmem [shape: f32[256,1], index: 4, kind: input, shape index: {}]
  %s5 = inlined_call_operand.vmem [shape: f32[256,1], index: 5, kind: input, shape index: {}]
  %s6 = inlined_call_operand.hbm [shape: f32[1,384], index: 6, kind: output, shape index: {}]
  %s7 = sld [smem:[#allocation0]]
  $region98: #{tpu_custom_call.1} parent=0
    _
  %s9 = ssub.s32 1, %s7
  %s10 = scalar_select 0, %s9, %s7
  $region1: #{tpu_custom_call.1} parent=0
    #allocation2 [shape = 'u8[16384]{0}', space=vmem, size = 0x4000, scoped, tag = 'input window, operand 0']
    #allocation3 [shape = 'u8[1024]{0}', space=vmem, size = 0x400, scoped, tag = 'output window, operand 0']
    #allocation4 [shape = 's32[2]{0}', space=sflag, size = 0x8, scoped, tag = 'scoped memory for tpu_custom_call.1']
    %11 = vsyncpa [#allocation4], 0
    %s12 = scalar_lea.sflag [#allocation4], 1
    %13 = vsyncpa %s12, 0
    loop: start=0, step=1, limit=5
    $region2: #{tpu_custom_call.1} parent=1 // loop_pre_header
      _
    $region3: #{tpu_custom_call.1} parent=1 // loop_header
      %s15 = sphi 0, %s19
      %p16 = scmp.ge.s32.totalorder %s15, 5
      %s25 = sphi 0, %s27
      %s28 = sphi 0, %s25
      %s29 = sphi 0, %s28
      %s45 = sphi 0, %s29
      %s49 = sphi 0, %s49
      %s51 = sphi 0, %s49
      %s52 = sphi 0, %s51
      %s66 = sphi 0, %s52
      %s70 = sphi 0, %s70
      %s72 = sphi 0, %s70
      %s73 = sphi 0, %s72
      %s87 = sphi 0, %s73
      %s91 = sphi 0, %s91
      %s93 = sphi 0, %s91
      %s94 = sphi 0, %s93
      %s108 = sphi 0, %s94
      %s112 = sphi 0, %s112
      %s114 = sphi 0, %s112
      %s115 = sphi 0, %s114
      %s129 = sphi 0, %s115
      %s133 = sphi 0, %s133
      %s135 = sphi 0, %s133
      %s136 = sphi 0, %s135
      %s150 = sphi 0, %s136
      %s156 = sphi 0, %s158
      %s159 = sphi 0, %s156
      %s160 = sphi 0, %s159
      %s176 = sphi 0, %s160
    $region4: #{tpu_custom_call.1} parent=1 // loop_header_branch
      %18 = sbr.rel (%p16) target = $region8
    $region5: #{tpu_custom_call.1} parent=1 // loop_body
      %s20 = ssub.s32 %s15, 1
      %s21 = ssub.s32 %s15, 2
      %s22 = sadd.s32 %s15, 1
      %s23 = ssub.s32 %s15, %s22
      %p24 = scmp.eq.s32.totalorder %s23, 0
      %s26 = sadd.s32 %s25, 1
      %s27 = scalar_select %p24, %s25, %s26
      %p30 = pneg %p24
      %p31 = scmp.eq.s32.totalorder %s15, 2
      %p32 = por %p30, %p31
      %p33 = scmp.ne.s32.totalorder %s25, %s28
      %p34 = scmp.eq.s32.totalorder %s15, 0
      %p35 = por %p33, %p34
      %p36 = scmp.ne.s32.totalorder %s25, %s28
      %p37 = scmp.eq.s32.totalorder %s20, 2
      %p38 = por %p36, %p37
      %p39 = scmp.ne.s32.totalorder %s28, %s29
      %p40 = scmp.eq.s32.totalorder %s20, 0
      %p41 = por %p39, %p40
      %p42 = scmp.ne.s32.totalorder %s28, %s29
      %p43 = scmp.eq.s32.totalorder %s21, 2
      %p44 = por %p42, %p43
      %p46 = scmp.ne.s32.totalorder %s29, %s45
      %p47 = scmp.eq.s32.totalorder %s21, 0
      %p48 = por %p46, %p47
      %s50 = sadd.s32 %s49, 1
      %p53 = scmp.eq.s32.totalorder %s15, 2
      %p54 = scmp.ne.s32.totalorder %s49, %s51
      %p55 = scmp.eq.s32.totalorder %s15, 0
      %p56 = por %p54, %p55
      %p57 = scmp.ne.s32.totalorder %s49, %s51
      %p58 = scmp.eq.s32.totalorder %s20, 2
      %p59 = por %p57, %p58
      %p60 = scmp.ne.s32.totalorder %s51, %s52
      %p61 = scmp.eq.s32.totalorder %s20, 0
      %p62 = por %p60, %p61
      %p63 = scmp.ne.s32.totalorder %s51, %s52
      %p64 = scmp.eq.s32.totalorder %s21, 2
      %p65 = por %p63, %p64
      %p67 = scmp.ne.s32.totalorder %s52, %s66
      %p68 = scmp.eq.s32.totalorder %s21, 0
      %p69 = por %p67, %p68
      %s71 = sadd.s32 %s70, 1
      %p74 = scmp.eq.s32.totalorder %s15, 2
      %p75 = scmp.ne.s32.totalorder %s70, %s72
      %p76 = scmp.eq.s32.totalorder %s15, 0
      %p77 = por %p75, %p76
      %p78 = scmp.ne.s32.totalorder %s70, %s72
      %p79 = scmp.eq.s32.totalorder %s20, 2
      %p80 = por %p78, %p79
      %p81 = scmp.ne.s32.totalorder %s72, %s73
      %p82 = scmp.eq.s32.totalorder %s20, 0
      %p83 = por %p81, %p82
      %p84 = scmp.ne.s32.totalorder %s72, %s73
      %p85 = scmp.eq.s32.totalorder %s21, 2
      %p86 = por %p84, %p85
      %p88 = scmp.ne.s32.totalorder %s73, %s87
      %p89 = scmp.eq.s32.totalorder %s21, 0
      %p90 = por %p88, %p89
      %s92 = sadd.s32 %s91, 1
      %p95 = scmp.eq.s32.totalorder %s15, 2
      %p96 = scmp.ne.s32.totalorder %s91, %s93
      %p97 = scmp.eq.s32.totalorder %s15, 0
      %p98 = por %p96, %p97
      %p99 = scmp.ne.s32.totalorder %s91, %s93
      %p100 = scmp.eq.s32.totalorder %s20, 2
      %p101 = por %p99, %p100
      %p102 = scmp.ne.s32.totalorder %s93, %s94
      %p103 = scmp.eq.s32.totalorder %s20, 0
      %p104 = por %p102, %p103
      %p105 = scmp.ne.s32.totalorder %s93, %s94
      %p106 = scmp.eq.s32.totalorder %s21, 2
      %p107 = por %p105, %p106
      %p109 = scmp.ne.s32.totalorder %s94, %s108
      %p110 = scmp.eq.s32.totalorder %s21, 0
      %p111 = por %p109, %p110
      %s113 = sadd.s32 %s112, 1
      %p116 = scmp.eq.s32.totalorder %s15, 2
      %p117 = scmp.ne.s32.totalorder %s112, %s114
      %p118 = scmp.eq.s32.totalorder %s15, 0
      %p119 = por %p117, %p118
      %p120 = scmp.ne.s32.totalorder %s112, %s114
      %p121 = scmp.eq.s32.totalorder %s20, 2
      %p122 = por %p120, %p121
      %p123 = scmp.ne.s32.totalorder %s114, %s115
      %p124 = scmp.eq.s32.totalorder %s20, 0
      %p125 = por %p123, %p124
      %p126 = scmp.ne.s32.totalorder %s114, %s115
      %p127 = scmp.eq.s32.totalorder %s21, 2
      %p128 = por %p126, %p127
      %p130 = scmp.ne.s32.totalorder %s115, %s129
      %p131 = scmp.eq.s32.totalorder %s21, 0
      %p132 = por %p130, %p131
      %s134 = sadd.s32 %s133, 1
      %p137 = scmp.eq.s32.totalorder %s15, 2
      %p138 = scmp.ne.s32.totalorder %s133, %s135
      %p139 = scmp.eq.s32.totalorder %s15, 0
      %p140 = por %p138, %p139
      %p141 = scmp.ne.s32.totalorder %s133, %s135
      %p142 = scmp.eq.s32.totalorder %s20, 2
      %p143 = por %p141, %p142
      %p144 = scmp.ne.s32.totalorder %s135, %s136
      %p145 = scmp.eq.s32.totalorder %s20, 0
      %p146 = por %p144, %p145
      %p147 = scmp.ne.s32.totalorder %s135, %s136
      %p148 = scmp.eq.s32.totalorder %s21, 2
      %p149 = por %p147, %p148
      %p151 = scmp.ne.s32.totalorder %s136, %s150
      %p152 = scmp.eq.s32.totalorder %s21, 0
      %p153 = por %p151, %p152
      %s154 = ssub.s32 %s15, %s22
      %p155 = scmp.eq.s32.totalorder %s154, 0
      %s157 = sadd.s32 %s156, 1
      %s158 = scalar_select %p155, %s156, %s157
      %p161 = pneg %p155
      %p162 = scmp.eq.s32.totalorder %s15, 2
      %p163 = por %p161, %p162
      %p164 = scmp.ne.s32.totalorder %s156, %s159
      %p165 = scmp.eq.s32.totalorder %s15, 0
      %p166 = por %p164, %p165
      %p167 = scmp.ne.s32.totalorder %s156, %s159
      %p168 = scmp.eq.s32.totalorder %s20, 2
      %p169 = por %p167, %p168
      %p170 = scmp.ne.s32.totalorder %s159, %s160
      %p171 = scmp.eq.s32.totalorder %s20, 0
      %p172 = por %p170, %p171
      %p173 = scmp.ne.s32.totalorder %s159, %s160
      %p174 = scmp.eq.s32.totalorder %s21, 2
      %p175 = por %p173, %p174
      %p177 = scmp.ne.s32.totalorder %s160, %s176
      %p178 = scmp.eq.s32.totalorder %s21, 0
      %p179 = por %p177, %p178
      %p180 = scmp.le.s32.totalorder 1, %s15
      %p181 = scmp.lt.s32.totalorder %s15, 4
      %p182 = pnand %p180, %p181
      %p183 = pneg %p182
      // Predicated region
      $region9: #{tpu_custom_call.1} parent=5 // pred_check
        _
      $region10: #{tpu_custom_call.1} parent=5 // pred_check_branch
        %185 = sbr.rel (%p182) target = $region12
      $region11: #{tpu_custom_call.1} parent=5 // pred_region
        %s186 = ssub.s32 %s15, 1
        // Predicated region
        $region13: #{tpu_custom_call.1} parent=11 // pred_check
          %p187 = pneg %p62
        $region14: #{tpu_custom_call.1} parent=11 // pred_check_branch
          %189 = sbr.rel (%p187) target = $region16
        $region15: #{tpu_custom_call.1} parent=11 // pred_region
          _
        $region16: #{tpu_custom_call.1} parent=11 // pred_fallthru
          _
        // Predicated region
        $region17: #{tpu_custom_call.1} parent=11 // pred_check
          %p190 = pneg %p83
        $region18: #{tpu_custom_call.1} parent=11 // pred_check_branch
          %192 = sbr.rel (%p190) target = $region20
        $region19: #{tpu_custom_call.1} parent=11 // pred_region
          _
        $region20: #{tpu_custom_call.1} parent=11 // pred_fallthru
          _
        // Predicated region
        $region21: #{tpu_custom_call.1} parent=11 // pred_check
          %p193 = pneg %p104
        $region22: #{tpu_custom_call.1} parent=11 // pred_check_branch
          %195 = sbr.rel (%p193) target = $region24
        $region23: #{tpu_custom_call.1} parent=11 // pred_region
          _
        $region24: #{tpu_custom_call.1} parent=11 // pred_fallthru
          _
        // Predicated region
        $region25: #{tpu_custom_call.1} parent=11 // pred_check
          %p196 = pneg %p125
        $region26: #{tpu_custom_call.1} parent=11 // pred_check_branch
          %198 = sbr.rel (%p196) target = $region28
        $region27: #{tpu_custom_call.1} parent=11 // pred_region
          _
        $region28: #{tpu_custom_call.1} parent=11 // pred_fallthru
          _
        // Predicated region
        $region29: #{tpu_custom_call.1} parent=11 // pred_check
          %p199 = pneg %p146
        $region30: #{tpu_custom_call.1} parent=11 // pred_check_branch
          %201 = sbr.rel (%p199) target = $region32
        $region31: #{tpu_custom_call.1} parent=11 // pred_region
          _
        $region32: #{tpu_custom_call.1} parent=11 // pred_fallthru
          _
      $region12: #{tpu_custom_call.1} parent=5 // pred_fallthru
        _
      %p202 = scmp.lt.s32.totalorder %s15, 3
      // Predicated region
      $region33: #{tpu_custom_call.1} parent=5 // pred_check
        %p203 = pneg %p202
      $region34: #{tpu_custom_call.1} parent=5 // pred_check_branch
        %205 = sbr.rel (%p203) target = $region36
      $region35: #{tpu_custom_call.1} parent=5 // pred_region
        // Predicated region
        $region37: #{tpu_custom_call.1} parent=35 // pred_check
          %p206 = pneg %p35
        $region38: #{tpu_custom_call.1} parent=35 // pred_check_branch
          %208 = sbr.rel (%p206) target = $region40
        $region39: #{tpu_custom_call.1} parent=35 // pred_region
          %s209 = sand.u32 %s25, 1
          %s210 = sand.u32 %s25, 1
          %s211 = smul.addr %s210, 16
          %s212 = scalar_lea.vmem [#allocation2], %s211
          %s213 = smul.addr %s15, 4
          %s214 = scalar_lea.vmem %s0, %s213
          // Predicated region
          $region41: #{tpu_custom_call.1} parent=39 // pred_check
            _
          $region42: #{tpu_custom_call.1} parent=39 // pred_check_branch
            %216 = sbr.rel (0) target = $region44
          $region43: #{tpu_custom_call.1} parent=39 // pred_region
            // Predicated region
            $region45: #{tpu_custom_call.1} parent=43 // pred_check
              _
            $region46: #{tpu_custom_call.1} parent=43 // pred_check_branch
              %218 = sbr.rel target = $region48
            $region47: #{tpu_custom_call.1} parent=43 // pred_region
              // Predicated region
              $region60: #{tpu_custom_call.1} parent=47 // pred_check
                _
              $region61: #{tpu_custom_call.1} parent=47 // pred_check_branch
                %240 = sbr.rel (0) target = $region63
              $region62: #{tpu_custom_call.1} parent=47 // pred_region
                loop: start=0, step=1, limit=1
                $region64: #{tpu_custom_call.1} parent=62 // loop_pre_header
                  _
                $region65: #{tpu_custom_call.1} parent=62 // loop_header
                  %s242 = sphi 0, %s246
                  %p243 = scmp.ge.s32.totalorder %s242, 1
                  %s247 = sphi %s214, %s214
                  %s248 = sphi %s212, %s212
                $region66: #{tpu_custom_call.1} parent=62 // loop_header_branch
                  %245 = sbr.rel (%p243) target = $region70
                $region67: #{tpu_custom_call.1} parent=62 // loop_body
                  _
                $region68: #{tpu_custom_call.1} parent=62 // loop_footer
                  %s246 = sadd.s32 1, %s242
                $region69: #{tpu_custom_call.1} parent=62 // loop_footer_branch
                  %241 = sbr.rel target = $region65
                $region70: #{tpu_custom_call.1} parent=62 // loop_exit
                  _
                %s250 = ssub.s32 16, 1
                loop: start=0, step=1, limit=1
                $region71: #{tpu_custom_call.1} parent=62 // loop_pre_header
                  _
                $region72: #{tpu_custom_call.1} parent=62 // loop_header
                  %s252 = sphi 0, %s256
                  %p253 = scmp.ge.s32.totalorder %s252, 1
                  %s257 = sphi %s214, %s214
                  %s258 = sphi %s212, %s212
                $region73: #{tpu_custom_call.1} parent=62 // loop_header_branch
                  %255 = sbr.rel (%p253) target = $region77
                $region74: #{tpu_custom_call.1} parent=62 // loop_body
                  %v259 = vld [vmem:[%s257] sm:%s250]
                  %260 = vst [vmem:[%s258] sm:%s250] %v259
                  %v261 = vld [vmem:[%s257 + $0xc] sm:%s250]
                  %262 = vst [vmem:[%s258 + $0x4] sm:%s250] %v261
                  %v263 = vld [vmem:[%s257 + $0x18] sm:%s250]
                  %264 = vst [vmem:[%s258 + $0x8] sm:%s250] %v263
                  %v265 = vld [vmem:[%s257 + $0x24] sm:%s250]
                  %266 = vst [vmem:[%s258 + $0xc] sm:%s250] %v265
                $region75: #{tpu_custom_call.1} parent=62 // loop_footer
                  %s256 = sadd.s32 1, %s252
                $region76: #{tpu_custom_call.1} parent=62 // loop_footer_branch
                  %251 = sbr.rel target = $region72
                $region77: #{tpu_custom_call.1} parent=62 // loop_exit
                  _
              $region63: #{tpu_custom_call.1} parent=47 // pred_fallthru
                _
            $region48: #{tpu_custom_call.1} parent=43 // pred_fallthru
              _
            // Predicated region
            $region49: #{tpu_custom_call.1} parent=43 // pred_check
              _
            $region50: #{tpu_custom_call.1} parent=43 // pred_check_branch
              %220 = sbr.rel (0) target = $region52
            $region51: #{tpu_custom_call.1} parent=43 // pred_region
              %s222 = ssub.s32 16, 1
              loop: start=0, step=1, limit=1
              $region53: #{tpu_custom_call.1} parent=51 // loop_pre_header
                _
              $region54: #{tpu_custom_call.1} parent=51 // loop_header
                %s224 = sphi 0, %s228
                %p225 = scmp.ge.s32.totalorder %s224, 1
                %s229 = sphi %s214, %s214
                %s230 = sphi %s212, %s212
              $region55: #{tpu_custom_call.1} parent=51 // loop_header_branch
                %227 = sbr.rel (%p225) target = $region59
              $region56: #{tpu_custom_call.1} parent=51 // loop_body
                %v231 = vld [vmem:[%s229] sm:%s222]
                %232 = vst [vmem:[%s230] sm:%s222] %v231
                %v233 = vld [vmem:[%s229 + $0xc] sm:%s222]
                %234 = vst [vmem:[%s230 + $0x4] sm:%s222] %v233
                %v235 = vld [vmem:[%s229 + $0x18] sm:%s222]
                %236 = vst [vmem:[%s230 + $0x8] sm:%s222] %v235
                %v237 = vld [vmem:[%s229 + $0x24] sm:%s222]
                %238 = vst [vmem:[%s230 + $0xc] sm:%s222] %v237
              $region57: #{tpu_custom_call.1} parent=51 // loop_footer
                %s228 = sadd.s32 1, %s224
              $region58: #{tpu_custom_call.1} parent=51 // loop_footer_branch
                %223 = sbr.rel target = $region54
              $region59: #{tpu_custom_call.1} parent=51 // loop_exit
                _
            $region52: #{tpu_custom_call.1} parent=43 // pred_fallthru
              _
          $region44: #{tpu_custom_call.1} parent=39 // pred_fallthru
            _
          %267 = vnop
        $region40: #{tpu_custom_call.1} parent=35 // pred_fallthru
          _
      $region36: #{tpu_custom_call.1} parent=5 // pred_fallthru
        _
      %p268 = scmp.le.s32.totalorder 1, %s15
      %p269 = scmp.lt.s32.totalorder %s15, 4
      %p270 = pnand %p268, %p269
      %p271 = pneg %p270
      // Predicated region
      $region78: #{tpu_custom_call.1} parent=5 // pred_check
        _
      $region79: #{tpu_custom_call.1} parent=5 // pred_check_branch
        %273 = sbr.rel (%p270) target = $region81
      $region80: #{tpu_custom_call.1} parent=5 // pred_region
        %s274 = ssub.s32 %s15, 1
        %s275 = sand.u32 %s28, 1
        %s276 = sand.u32 %s28, 1
        %s277 = smul.addr %s276, 16
        %s278 = scalar_lea.vmem [#allocation2], %s277
        // Predicated region
        $region82: #{tpu_custom_call.1} parent=80 // pred_check
          %p279 = pneg %p41
        $region83: #{tpu_custom_call.1} parent=80 // pred_check_branch
          %281 = sbr.rel (%p279) target = $region85
        $region84: #{tpu_custom_call.1} parent=80 // pred_region
          _
        $region85: #{tpu_custom_call.1} parent=80 // pred_fallthru
          _
        %s282 = sand.u32 %s28, 1
        %s283 = sand.u32 %s28, 1
        %s284 = smul.addr %s283, 16
        %s285 = scalar_lea.vmem [#allocation2], %s284
        %p286 = pneg %p41
        %p287 = pneg %p38
        %p288 = pneg %p62
        %p289 = pneg %p59
        %p290 = pneg %p83
        %p291 = pneg %p80
        %p292 = pneg %p104
        %p293 = pneg %p101
        %p294 = pneg %p125
        %p295 = pneg %p122
        %p296 = pneg %p146
        %p297 = pneg %p143
        %p298 = pneg %p172
        %p299 = pneg %p169
        %s300 = sand.u32 %s159, 1
        %s301 = scalar_lea.sflag [#allocation4], %s300
        %s302 = sand.u32 %s159, 1
        %s303 = scalar_lea.vmem [#allocation3], %s302
        %v305 = vld [vmem:[%s1] sm:$0xf]
        %v306 = vld [vmem:[%s1 + $0x4] sm:$0xf]
        %v307 = vld [vmem:[%s1 + $0x8] sm:$0xf]
        %v308 = vld [vmem:[%s1 + $0xc] sm:$0xf]
        %v309 = vld [vmem:[%s1 + $0x10] sm:$0xf]
        %v310 = vld [vmem:[%s1 + $0x14] sm:$0xf]
        %v311 = vld [vmem:[%s1 + $0x18] sm:$0xf]
        %v312 = vld [vmem:[%s1 + $0x1c] sm:$0xf]
        %v313 = vld [vmem:[%s1 + $0x20] sm:$0xf]
        %v314 = vld [vmem:[%s1 + $0x24] sm:$0xf]
        %v315 = vld [vmem:[%s1 + $0x28] sm:$0xf]
        %v316 = vld [vmem:[%s1 + $0x2c] sm:$0xf]
        %v317 = vld [vmem:[%s1 + $0x30] sm:$0xf]
        %v318 = vld [vmem:[%s1 + $0x34] sm:$0xf]
        %v319 = vld [vmem:[%s1 + $0x38] sm:$0xf]
        %v320 = vld [vmem:[%s1 + $0x3c] sm:$0xf]
        %v321 = vld [vmem:[%s1 + $0x40] sm:$0xf]
        %v322 = vld [vmem:[%s1 + $0x44] sm:$0xf]
        %v323 = vld [vmem:[%s1 + $0x48] sm:$0xf]
        %v324 = vld [vmem:[%s1 + $0x4c] sm:$0xf]
        %v325 = vld [vmem:[%s1 + $0x50] sm:$0xf]
        %v326 = vld [vmem:[%s1 + $0x54] sm:$0xf]
        %v327 = vld [vmem:[%s1 + $0x58] sm:$0xf]
        %v328 = vld [vmem:[%s1 + $0x5c] sm:$0xf]
        %v329 = vld [vmem:[%s1 + $0x60] sm:$0xf]
        %v330 = vld [vmem:[%s1 + $0x64] sm:$0xf]
        %v331 = vld [vmem:[%s1 + $0x68] sm:$0xf]
        %v332 = vld [vmem:[%s1 + $0x6c] sm:$0xf]
        %v333 = vld [vmem:[%s1 + $0x70] sm:$0xf]
        %v334 = vld [vmem:[%s1 + $0x74] sm:$0xf]
        %v335 = vld [vmem:[%s1 + $0x78] sm:$0xf]
        %v336 = vld [vmem:[%s1 + $0x7c] sm:$0xf]
        %v337 = vld [vmem:[%s278] sm:$0xf]
        %v338 = vld [vmem:[%s278 + $0x4] sm:$0xf]
        %v339 = vld [vmem:[%s278 + $0x8] sm:$0xf]
        %v340 = vld [vmem:[%s278 + $0xc] sm:$0xf]
        %v341 = vld [vmem:[%s2] sm:$0xff]
        %v342 = vld [vmem:[%s2 + $0x8] sm:$0xff]
        %v343 = vld [vmem:[%s2 + $0x10] sm:$0xff]
        %v344 = vld [vmem:[%s2 + $0x18] sm:$0xff]
        %v345 = vld [vmem:[%s2 + $0x20] sm:$0xff]
        %v346 = vld [vmem:[%s2 + $0x28] sm:$0xff]
        %v347 = vld [vmem:[%s2 + $0x30] sm:$0xff]
        %v348 = vld [vmem:[%s2 + $0x38] sm:$0xff]
        %v349 = vld [vmem:[%s2 + $0x40] sm:$0xff]
        %v350 = vld [vmem:[%s2 + $0x48] sm:$0xff]
        %v351 = vld [vmem:[%s2 + $0x50] sm:$0xff]
        %v352 = vld [vmem:[%s2 + $0x58] sm:$0xff]
        %v353 = vld [vmem:[%s2 + $0x60] sm:$0xff]
        %v354 = vld [vmem:[%s2 + $0x68] sm:$0xff]
        %v355 = vld [vmem:[%s2 + $0x70] sm:$0xff]
        %v356 = vld [vmem:[%s2 + $0x78] sm:$0xff]
        %v357 = vld [vmem:[%s2 + $0x80] sm:$0xff]
        %v358 = vld [vmem:[%s2 + $0x88] sm:$0xff]
        %v359 = vld [vmem:[%s2 + $0x90] sm:$0xff]
        %v360 = vld [vmem:[%s2 + $0x98] sm:$0xff]
        %v361 = vld [vmem:[%s2 + $0xa0] sm:$0xff]
        %v362 = vld [vmem:[%s2 + $0xa8] sm:$0xff]
        %v363 = vld [vmem:[%s2 + $0xb0] sm:$0xff]
        %v364 = vld [vmem:[%s2 + $0xb8] sm:$0xff]
        %v365 = vld [vmem:[%s2 + $0xc0] sm:$0xff]
        %v366 = vld [vmem:[%s2 + $0xc8] sm:$0xff]
        %v367 = vld [vmem:[%s2 + $0xd0] sm:$0xff]
        %v368 = vld [vmem:[%s2 + $0xd8] sm:$0xff]
        %v369 = vld [vmem:[%s2 + $0xe0] sm:$0xff]
        %v370 = vld [vmem:[%s2 + $0xe8] sm:$0xff]
        %v371 = vld [vmem:[%s2 + $0xf0] sm:$0xff]
        %v372 = vld [vmem:[%s2 + $0xf8] sm:$0xff]
        %374 = vset.pattern.permute.xlu0 0
        %375 = vperm.xlu0 %374, %v341
        %v376 = vpop.permute.xlu0 %375
        %379 = vset.pattern.permute.xlu0 0
        %380 = vperm.xlu0 %379, %v342
        %v381 = vpop.permute.xlu0 %380
        %384 = vset.pattern.permute.xlu0 0
        %385 = vperm.xlu0 %384, %v343
        %v386 = vpop.permute.xlu0 %385
        %389 = vset.pattern.permute.xlu0 0
        %390 = vperm.xlu0 %389, %v344
        %v391 = vpop.permute.xlu0 %390
        %394 = vset.pattern.permute.xlu0 0
        %395 = vperm.xlu0 %394, %v345
        %v396 = vpop.permute.xlu0 %395
        %399 = vset.pattern.permute.xlu0 0
        %400 = vperm.xlu0 %399, %v346
        %v401 = vpop.permute.xlu0 %400
        %404 = vset.pattern.permute.xlu0 0
        %405 = vperm.xlu0 %404, %v347
        %v406 = vpop.permute.xlu0 %405
        %409 = vset.pattern.permute.xlu0 0
        %410 = vperm.xlu0 %409, %v348
        %v411 = vpop.permute.xlu0 %410
        %414 = vset.pattern.permute.xlu0 0
        %415 = vperm.xlu0 %414, %v349
        %v416 = vpop.permute.xlu0 %415
        %419 = vset.pattern.permute.xlu0 0
        %420 = vperm.xlu0 %419, %v350
        %v421 = vpop.permute.xlu0 %420
        %424 = vset.pattern.permute.xlu0 0
        %425 = vperm.xlu0 %424, %v351
        %v426 = vpop.permute.xlu0 %425
        %429 = vset.pattern.permute.xlu0 0
        %430 = vperm.xlu0 %429, %v352
        %v431 = vpop.permute.xlu0 %430
        %434 = vset.pattern.permute.xlu0 0
        %435 = vperm.xlu0 %434, %v353
        %v436 = vpop.permute.xlu0 %435
        %439 = vset.pattern.permute.xlu0 0
        %440 = vperm.xlu0 %439, %v354
        %v441 = vpop.permute.xlu0 %440
        %444 = vset.pattern.permute.xlu0 0
        %445 = vperm.xlu0 %444, %v355
        %v446 = vpop.permute.xlu0 %445
        %449 = vset.pattern.permute.xlu0 0
        %450 = vperm.xlu0 %449, %v356
        %v451 = vpop.permute.xlu0 %450
        %454 = vset.pattern.permute.xlu0 0
        %455 = vperm.xlu0 %454, %v357
        %v456 = vpop.permute.xlu0 %455
        %459 = vset.pattern.permute.xlu0 0
        %460 = vperm.xlu0 %459, %v358
        %v461 = vpop.permute.xlu0 %460
        %464 = vset.pattern.permute.xlu0 0
        %465 = vperm.xlu0 %464, %v359
        %v466 = vpop.permute.xlu0 %465
        %469 = vset.pattern.permute.xlu0 0
        %470 = vperm.xlu0 %469, %v360
        %v471 = vpop.permute.xlu0 %470
        %474 = vset.pattern.permute.xlu0 0
        %475 = vperm.xlu0 %474, %v361
        %v476 = vpop.permute.xlu0 %475
        %479 = vset.pattern.permute.xlu0 0
        %480 = vperm.xlu0 %479, %v362
        %v481 = vpop.permute.xlu0 %480
        %484 = vset.pattern.permute.xlu0 0
        %485 = vperm.xlu0 %484, %v363
        %v486 = vpop.permute.xlu0 %485
        %489 = vset.pattern.permute.xlu0 0
        %490 = vperm.xlu0 %489, %v364
        %v491 = vpop.permute.xlu0 %490
        %494 = vset.pattern.permute.xlu0 0
        %495 = vperm.xlu0 %494, %v365
        %v496 = vpop.permute.xlu0 %495
        %499 = vset.pattern.permute.xlu0 0
        %500 = vperm.xlu0 %499, %v366
        %v501 = vpop.permute.xlu0 %500
        %504 = vset.pattern.permute.xlu0 0
        %505 = vperm.xlu0 %504, %v367
        %v506 = vpop.permute.xlu0 %505
        %509 = vset.pattern.permute.xlu0 0
        %510 = vperm.xlu0 %509, %v368
        %v511 = vpop.permute.xlu0 %510
        %514 = vset.pattern.permute.xlu0 0
        %515 = vperm.xlu0 %514, %v369
        %v516 = vpop.permute.xlu0 %515
        %519 = vset.pattern.permute.xlu0 0
        %520 = vperm.xlu0 %519, %v370
        %v521 = vpop.permute.xlu0 %520
        %524 = vset.pattern.permute.xlu0 0
        %525 = vperm.xlu0 %524, %v371
        %v526 = vpop.permute.xlu0 %525
        %529 = vset.pattern.permute.xlu0 0
        %530 = vperm.xlu0 %529, %v372
        %v531 = vpop.permute.xlu0 %530
        %v565 = vunpack.c.l.b16 %v305
        %v566 = vunpack.c.l.b16 %v306
        %v567 = vunpack.c.l.b16 %v307
        %v568 = vunpack.c.l.b16 %v308
        %v569 = vunpack.c.l.b16 %v309
        %v570 = vunpack.c.l.b16 %v310
        %v571 = vunpack.c.l.b16 %v311
        %v572 = vunpack.c.l.b16 %v312
        %v573 = vunpack.c.l.b16 %v313
        %v574 = vunpack.c.l.b16 %v314
        %v575 = vunpack.c.l.b16 %v315
        %v576 = vunpack.c.l.b16 %v316
        %v577 = vunpack.c.l.b16 %v317
        %v578 = vunpack.c.l.b16 %v318
        %v579 = vunpack.c.l.b16 %v319
        %v580 = vunpack.c.l.b16 %v320
        %v581 = vunpack.c.l.b16 %v321
        %v582 = vunpack.c.l.b16 %v322
        %v583 = vunpack.c.l.b16 %v323
        %v584 = vunpack.c.l.b16 %v324
        %v585 = vunpack.c.l.b16 %v325
        %v586 = vunpack.c.l.b16 %v326
        %v587 = vunpack.c.l.b16 %v327
        %v588 = vunpack.c.l.b16 %v328
        %v589 = vunpack.c.l.b16 %v329
        %v590 = vunpack.c.l.b16 %v330
        %v591 = vunpack.c.l.b16 %v331
        %v592 = vunpack.c.l.b16 %v332
        %v593 = vunpack.c.l.b16 %v333
        %v594 = vunpack.c.l.b16 %v334
        %v595 = vunpack.c.l.b16 %v335
        %v596 = vunpack.c.l.b16 %v336
        %v597 = vpack.c.b16 %v566, %v565
        %v598 = vpack.c.b16 %v568, %v567
        %v599 = vpack.c.b16 %v570, %v569
        %v600 = vpack.c.b16 %v572, %v571
        %v601 = vpack.c.b16 %v574, %v573
        %v602 = vpack.c.b16 %v576, %v575
        %v603 = vpack.c.b16 %v578, %v577
        %v604 = vpack.c.b16 %v580, %v579
        %v605 = vpack.c.b16 %v582, %v581
        %v606 = vpack.c.b16 %v584, %v583
        %v607 = vpack.c.b16 %v586, %v585
        %v608 = vpack.c.b16 %v588, %v587
        %v609 = vpack.c.b16 %v590, %v589
        %v610 = vpack.c.b16 %v592, %v591
        %v611 = vpack.c.b16 %v594, %v593
        %v612 = vpack.c.b16 %v596, %v595
        %v617 = vunpack.c.l.b16 %v337
        %v618 = vunpack.c.l.b16 %v338
        %v619 = vunpack.c.l.b16 %v339
        %v620 = vunpack.c.l.b16 %v340
        %v621 = vpack.c.b16 %v618, %v617
        %v622 = vpack.c.b16 %v620, %v619
        %vm625 = vcmask 261120
        %v627 = vsel %vm625, %v597, 0
        %v630 = vsel %vm625, %v598, 0
        %v633 = vsel %vm625, %v599, 0
        %v636 = vsel %vm625, %v600, 0
        %v639 = vsel %vm625, %v601, 0
        %v642 = vsel %vm625, %v602, 0
        %v645 = vsel %vm625, %v603, 0
        %v648 = vsel %vm625, %v604, 0
        %v651 = vsel %vm625, %v605, 0
        %v654 = vsel %vm625, %v606, 0
        %v657 = vsel %vm625, %v607, 0
        %v660 = vsel %vm625, %v608, 0
        %v663 = vsel %vm625, %v609, 0
        %v666 = vsel %vm625, %v610, 0
        %v669 = vsel %vm625, %v611, 0
        %v672 = vsel %vm625, %v612, 0
        %674 = vmatprep.subr.bf16.mxu0 0
        %675 = vmatpush1.bf16.msra.mxu0 0
        %676 = vmatprep.subr.bf16.mxu0 0
        %677 = vmatpush1.bf16.msra.mxu0 0
        %678 = vmatprep.subr.bf16.mxu0 0
        %679 = vmatpush1.bf16.msra.mxu0 0
        %680 = vmatprep.subr.bf16.mxu0 0
        %681 = vmatpush1.bf16.msra.mxu0 0
        %682 = vmatprep.subr.bf16.mxu0 0
        %683 = vmatpush1.bf16.msra.mxu0 0
        %684 = vmatprep.subr.bf16.mxu0 0
        %685 = vmatpush1.bf16.msra.mxu0 0
        %686 = vmatprep.subr.bf16.mxu0 0
        %687 = vmatpush1.bf16.msra.mxu0 %v622
        %688 = vmatprep.subr.bf16.mxu0 0
        %689 = vmatpush1.bf16.msra.mxu0 %v621
        %690 = vmatprep.subr.bf16.mxu0 0
        %691 = vmatpush2.bf16.msra.mxu0 0
        %692 = vmatprep.subr.bf16.mxu0 0
        %693 = vmatpush2.bf16.msra.mxu0 0
        %694 = vmatprep.subr.bf16.mxu0 0
        %695 = vmatpush2.bf16.msra.mxu0 0
        %696 = vmatprep.subr.bf16.mxu0 0
        %697 = vmatpush2.bf16.msra.mxu0 0
        %698 = vmatprep.subr.bf16.mxu0 0
        %699 = vmatpush2.bf16.msra.mxu0 0
        %700 = vmatprep.subr.bf16.mxu0 0
        %701 = vmatpush2.bf16.msra.mxu0 0
        %702 = vmatprep.subr.bf16.mxu0 0
        %703 = vmatpush2.bf16.msra.mxu0 0
        %704 = vmatprep.subr.bf16.mxu0 0
        %705 = vmatpush2.bf16.msra.mxu0 0
        %706 = vmatprep.mubr.bf16.mxu0 0
        %707 = vmatmul.mubr.bf16.gmra.mxu0 %v627
        %v708 = vpop.f32.mrf.mxu0
        %v709 = vadd.f32 %v376, %v708
        %v710 = vpop.f32.mrf.mxu0
        %v711 = vpop.f32.mrf.mxu0
        %v712 = vadd.f32 %v381, %v711
        %v713 = vpop.f32.mrf.mxu0
        %714 = vmatprep.mubr.bf16.mxu0 0
        %715 = vmatmul.mubr.bf16.gmra.mxu0 %v630
        %v716 = vpop.f32.mrf.mxu0
        %v717 = vadd.f32 %v386, %v716
        %v718 = vpop.f32.mrf.mxu0
        %v719 = vpop.f32.mrf.mxu0
        %v720 = vadd.f32 %v391, %v719
        %v721 = vpop.f32.mrf.mxu0
        %722 = vmatprep.mubr.bf16.mxu0 0
        %723 = vmatmul.mubr.bf16.gmra.mxu0 %v633
        %v724 = vpop.f32.mrf.mxu0
        %v725 = vadd.f32 %v396, %v724
        %v726 = vpop.f32.mrf.mxu0
        %v727 = vpop.f32.mrf.mxu0
        %v728 = vadd.f32 %v401, %v727
        %v729 = vpop.f32.mrf.mxu0
        %730 = vmatprep.mubr.bf16.mxu0 0
        %731 = vmatmul.mubr.bf16.gmra.mxu0 %v636
        %v732 = vpop.f32.mrf.mxu0
        %v733 = vadd.f32 %v406, %v732
        %v734 = vpop.f32.mrf.mxu0
        %v735 = vpop.f32.mrf.mxu0
        %v736 = vadd.f32 %v411, %v735
        %v737 = vpop.f32.mrf.mxu0
        %738 = vmatprep.mubr.bf16.mxu0 0
        %739 = vmatmul.mubr.bf16.gmra.mxu0 %v639
        %v740 = vpop.f32.mrf.mxu0
        %v741 = vadd.f32 %v416, %v740
        %v742 = vpop.f32.mrf.mxu0
        %v743 = vpop.f32.mrf.mxu0
        %v744 = vadd.f32 %v421, %v743
        %v745 = vpop.f32.mrf.mxu0
        %746 = vmatprep.mubr.bf16.mxu0 0
        %747 = vmatmul.mubr.bf16.gmra.mxu0 %v642
        %v748 = vpop.f32.mrf.mxu0
        %v749 = vadd.f32 %v426, %v748
        %v750 = vpop.f32.mrf.mxu0
        %v751 = vpop.f32.mrf.mxu0
        %v752 = vadd.f32 %v431, %v751
        %v753 = vpop.f32.mrf.mxu0
        %754 = vmatprep.mubr.bf16.mxu0 0
        %755 = vmatmul.mubr.bf16.gmra.mxu0 %v645
        %v756 = vpop.f32.mrf.mxu0
        %v757 = vadd.f32 %v436, %v756
        %v758 = vpop.f32.mrf.mxu0
        %v759 = vpop.f32.mrf.mxu0
        %v760 = vadd.f32 %v441, %v759
        %v761 = vpop.f32.mrf.mxu0
        %762 = vmatprep.mubr.bf16.mxu0 0
        %763 = vmatmul.mubr.bf16.gmra.mxu0 %v648
        %v764 = vpop.f32.mrf.mxu0
        %v765 = vadd.f32 %v446, %v764
        %v766 = vpop.f32.mrf.mxu0
        %v767 = vpop.f32.mrf.mxu0
        %v768 = vadd.f32 %v451, %v767
        %v769 = vpop.f32.mrf.mxu0
        %770 = vmatprep.mubr.bf16.mxu0 0
        %771 = vmatmul.mubr.bf16.gmra.mxu0 %v651
        %v772 = vpop.f32.mrf.mxu0
        %v773 = vadd.f32 %v456, %v772
        %v774 = vpop.f32.mrf.mxu0
        %v775 = vpop.f32.mrf.mxu0
        %v776 = vadd.f32 %v461, %v775
        %v777 = vpop.f32.mrf.mxu0
        %778 = vmatprep.mubr.bf16.mxu0 0
        %779 = vmatmul.mubr.bf16.gmra.mxu0 %v654
        %v780 = vpop.f32.mrf.mxu0
        %v781 = vadd.f32 %v466, %v780
        %v782 = vpop.f32.mrf.mxu0
        %v783 = vpop.f32.mrf.mxu0
        %v784 = vadd.f32 %v471, %v783
        %v785 = vpop.f32.mrf.mxu0
        %786 = vmatprep.mubr.bf16.mxu0 0
        %787 = vmatmul.mubr.bf16.gmra.mxu0 %v657
        %v788 = vpop.f32.mrf.mxu0
        %v789 = vadd.f32 %v476, %v788
        %v790 = vpop.f32.mrf.mxu0
        %v791 = vpop.f32.mrf.mxu0
        %v792 = vadd.f32 %v481, %v791
        %v793 = vpop.f32.mrf.mxu0
        %794 = vmatprep.mubr.bf16.mxu0 0
        %795 = vmatmul.mubr.bf16.gmra.mxu0 %v660
        %v796 = vpop.f32.mrf.mxu0
        %v797 = vadd.f32 %v486, %v796
        %v798 = vpop.f32.mrf.mxu0
        %v799 = vpop.f32.mrf.mxu0
        %v800 = vadd.f32 %v491, %v799
        %v801 = vpop.f32.mrf.mxu0
        %802 = vmatprep.mubr.bf16.mxu0 0
        %803 = vmatmul.mubr.bf16.gmra.mxu0 %v663
        %v804 = vpop.f32.mrf.mxu0
        %v805 = vadd.f32 %v496, %v804
        %v806 = vpop.f32.mrf.mxu0
        %v807 = vpop.f32.mrf.mxu0
        %v808 = vadd.f32 %v501, %v807
        %v809 = vpop.f32.mrf.mxu0
        %810 = vmatprep.mubr.bf16.mxu0 0
        %811 = vmatmul.mubr.bf16.gmra.mxu0 %v666
        %v812 = vpop.f32.mrf.mxu0
        %v813 = vadd.f32 %v506, %v812
        %v814 = vpop.f32.mrf.mxu0
        %v815 = vpop.f32.mrf.mxu0
        %v816 = vadd.f32 %v511, %v815
        %v817 = vpop.f32.mrf.mxu0
        %818 = vmatprep.mubr.bf16.mxu0 0
        %819 = vmatmul.mubr.bf16.gmra.mxu0 %v669
        %v820 = vpop.f32.mrf.mxu0
        %v821 = vadd.f32 %v516, %v820
        %v822 = vpop.f32.mrf.mxu0
        %v823 = vpop.f32.mrf.mxu0
        %v824 = vadd.f32 %v521, %v823
        %v825 = vpop.f32.mrf.mxu0
        %826 = vmatprep.mubr.bf16.mxu0 0
        %827 = vmatmul.mubr.bf16.gmra.mxu0 %v672
        %v828 = vpop.f32.mrf.mxu0
        %v829 = vadd.f32 %v526, %v828
        %v830 = vpop.f32.mrf.mxu0
        %v831 = vpop.f32.mrf.mxu0
        %v832 = vadd.f32 %v531, %v831
        %v833 = vpop.f32.mrf.mxu0
        %834 = vdwg.mxu0
        %v835 = vmax.f32 %v709, 0.0
        %v836 = vmax.f32 %v712, 0.0
        %v837 = vmax.f32 %v717, 0.0
        %v838 = vmax.f32 %v720, 0.0
        %v839 = vmax.f32 %v725, 0.0
        %v840 = vmax.f32 %v728, 0.0
        %v841 = vmax.f32 %v733, 0.0
        %v842 = vmax.f32 %v736, 0.0
        %v843 = vmax.f32 %v741, 0.0
        %v844 = vmax.f32 %v744, 0.0
        %v845 = vmax.f32 %v749, 0.0
        %v846 = vmax.f32 %v752, 0.0
        %v847 = vmax.f32 %v757, 0.0
        %v848 = vmax.f32 %v760, 0.0
        %v849 = vmax.f32 %v765, 0.0
        %v850 = vmax.f32 %v768, 0.0
        %v851 = vmax.f32 %v773, 0.0
        %v852 = vmax.f32 %v776, 0.0
        %v853 = vmax.f32 %v781, 0.0
        %v854 = vmax.f32 %v784, 0.0
        %v855 = vmax.f32 %v789, 0.0
        %v856 = vmax.f32 %v792, 0.0
        %v857 = vmax.f32 %v797, 0.0
        %v858 = vmax.f32 %v800, 0.0
        %v859 = vmax.f32 %v805, 0.0
        %v860 = vmax.f32 %v808, 0.0
        %v861 = vmax.f32 %v813, 0.0
        %v862 = vmax.f32 %v816, 0.0
        %v863 = vmax.f32 %v821, 0.0
        %v864 = vmax.f32 %v824, 0.0
        %v865 = vmax.f32 %v829, 0.0
        %v866 = vmax.f32 %v832, 0.0
        %v867 = vld [vmem:[%s3] sm:$0xff]
        %v868 = vld [vmem:[%s3 + $0x8] sm:$0xff]
        %v869 = vld [vmem:[%s3 + $0x10] sm:$0xff]
        %v870 = vld [vmem:[%s3 + $0x18] sm:$0xff]
        %v871 = vld [vmem:[%s3 + $0x20] sm:$0xff]
        %v872 = vld [vmem:[%s3 + $0x28] sm:$0xff]
        %v873 = vld [vmem:[%s3 + $0x30] sm:$0xff]
        %v874 = vld [vmem:[%s3 + $0x38] sm:$0xff]
        %v875 = vld [vmem:[%s3 + $0x40] sm:$0xff]
        %v876 = vld [vmem:[%s3 + $0x48] sm:$0xff]
        %v877 = vld [vmem:[%s3 + $0x50] sm:$0xff]
        %v878 = vld [vmem:[%s3 + $0x58] sm:$0xff]
        %v879 = vld [vmem:[%s3 + $0x60] sm:$0xff]
        %v880 = vld [vmem:[%s3 + $0x68] sm:$0xff]
        %v881 = vld [vmem:[%s3 + $0x70] sm:$0xff]
        %v882 = vld [vmem:[%s3 + $0x78] sm:$0xff]
        %v883 = vld [vmem:[%s3 + $0x80] sm:$0xff]
        %v884 = vld [vmem:[%s3 + $0x88] sm:$0xff]
        %v885 = vld [vmem:[%s3 + $0x90] sm:$0xff]
        %v886 = vld [vmem:[%s3 + $0x98] sm:$0xff]
        %v887 = vld [vmem:[%s3 + $0xa0] sm:$0xff]
        %v888 = vld [vmem:[%s3 + $0xa8] sm:$0xff]
        %v889 = vld [vmem:[%s3 + $0xb0] sm:$0xff]
        %v890 = vld [vmem:[%s3 + $0xb8] sm:$0xff]
        %v891 = vld [vmem:[%s3 + $0xc0] sm:$0xff]
        %v892 = vld [vmem:[%s3 + $0xc8] sm:$0xff]
        %v893 = vld [vmem:[%s3 + $0xd0] sm:$0xff]
        %v894 = vld [vmem:[%s3 + $0xd8] sm:$0xff]
        %v895 = vld [vmem:[%s3 + $0xe0] sm:$0xff]
        %v896 = vld [vmem:[%s3 + $0xe8] sm:$0xff]
        %v897 = vld [vmem:[%s3 + $0xf0] sm:$0xff]
        %v898 = vld [vmem:[%s3 + $0xf8] sm:$0xff]
        %v899 = vpack.c.bf16 %v836, %v835
        %v900 = vpack.c.bf16 %v838, %v837
        %v901 = vpack.c.bf16 %v840, %v839
        %v902 = vpack.c.bf16 %v842, %v841
        %v903 = vpack.c.bf16 %v844, %v843
        %v904 = vpack.c.bf16 %v846, %v845
        %v905 = vpack.c.bf16 %v848, %v847
        %v906 = vpack.c.bf16 %v850, %v849
        %v907 = vpack.c.bf16 %v852, %v851
        %v908 = vpack.c.bf16 %v854, %v853
        %v909 = vpack.c.bf16 %v856, %v855
        %v910 = vpack.c.bf16 %v858, %v857
        %v911 = vpack.c.bf16 %v860, %v859
        %v912 = vpack.c.bf16 %v862, %v861
        %v913 = vpack.c.bf16 %v864, %v863
        %v914 = vpack.c.bf16 %v866, %v865
        %v915 = vld [vmem:[%s4] sm:$0xff]
        %v916 = vld [vmem:[%s4 + $0x8] sm:$0xff]
        %v917 = vld [vmem:[%s4 + $0x10] sm:$0xff]
        %v918 = vld [vmem:[%s4 + $0x18] sm:$0xff]
        %v919 = vld [vmem:[%s4 + $0x20] sm:$0xff]
        %v920 = vld [vmem:[%s4 + $0x28] sm:$0xff]
        %v921 = vld [vmem:[%s4 + $0x30] sm:$0xff]
        %v922 = vld [vmem:[%s4 + $0x38] sm:$0xff]
        %v923 = vld [vmem:[%s4 + $0x40] sm:$0xff]
        %v924 = vld [vmem:[%s4 + $0x48] sm:$0xff]
        %v925 = vld [vmem:[%s4 + $0x50] sm:$0xff]
        %v926 = vld [vmem:[%s4 + $0x58] sm:$0xff]
        %v927 = vld [vmem:[%s4 + $0x60] sm:$0xff]
        %v928 = vld [vmem:[%s4 + $0x68] sm:$0xff]
        %v929 = vld [vmem:[%s4 + $0x70] sm:$0xff]
        %v930 = vld [vmem:[%s4 + $0x78] sm:$0xff]
        %v931 = vld [vmem:[%s4 + $0x80] sm:$0xff]
        %v932 = vld [vmem:[%s4 + $0x88] sm:$0xff]
        %v933 = vld [vmem:[%s4 + $0x90] sm:$0xff]
        %v934 = vld [vmem:[%s4 + $0x98] sm:$0xff]
        %v935 = vld [vmem:[%s4 + $0xa0] sm:$0xff]
        %v936 = vld [vmem:[%s4 + $0xa8] sm:$0xff]
        %v937 = vld [vmem:[%s4 + $0xb0] sm:$0xff]
        %v938 = vld [vmem:[%s4 + $0xb8] sm:$0xff]
        %v939 = vld [vmem:[%s4 + $0xc0] sm:$0xff]
        %v940 = vld [vmem:[%s4 + $0xc8] sm:$0xff]
        %v941 = vld [vmem:[%s4 + $0xd0] sm:$0xff]
        %v942 = vld [vmem:[%s4 + $0xd8] sm:$0xff]
        %v943 = vld [vmem:[%s4 + $0xe0] sm:$0xff]
        %v944 = vld [vmem:[%s4 + $0xe8] sm:$0xff]
        %v945 = vld [vmem:[%s4 + $0xf0] sm:$0xff]
        %v946 = vld [vmem:[%s4 + $0xf8] sm:$0xff]
        %948 = vset.pattern.permute.xlu0 0
        %949 = vperm.xlu0 %948, %v915
        %v950 = vpop.permute.xlu0 %949
        %953 = vset.pattern.permute.xlu0 0
        %954 = vperm.xlu0 %953, %v916
        %v955 = vpop.permute.xlu0 %954
        %958 = vset.pattern.permute.xlu0 0
        %959 = vperm.xlu0 %958, %v917
        %v960 = vpop.permute.xlu0 %959
        %963 = vset.pattern.permute.xlu0 0
        %964 = vperm.xlu0 %963, %v918
        %v965 = vpop.permute.xlu0 %964
        %968 = vset.pattern.permute.xlu0 0
        %969 = vperm.xlu0 %968, %v919
        %v970 = vpop.permute.xlu0 %969
        %973 = vset.pattern.permute.xlu0 0
        %974 = vperm.xlu0 %973, %v920
        %v975 = vpop.permute.xlu0 %974
        %978 = vset.pattern.permute.xlu0 0
        %979 = vperm.xlu0 %978, %v921
        %v980 = vpop.permute.xlu0 %979
        %983 = vset.pattern.permute.xlu0 0
        %984 = vperm.xlu0 %983, %v922
        %v985 = vpop.permute.xlu0 %984
        %988 = vset.pattern.permute.xlu0 0
        %989 = vperm.xlu0 %988, %v923
        %v990 = vpop.permute.xlu0 %989
        %993 = vset.pattern.permute.xlu0 0
        %994 = vperm.xlu0 %993, %v924
        %v995 = vpop.permute.xlu0 %994
        %998 = vset.pattern.permute.xlu0 0
        %999 = vperm.xlu0 %998, %v925
        %v1000 = vpop.permute.xlu0 %999
        %1003 = vset.pattern.permute.xlu0 0
        %1004 = vperm.xlu0 %1003, %v926
        %v1005 = vpop.permute.xlu0 %1004
        %1008 = vset.pattern.permute.xlu0 0
        %1009 = vperm.xlu0 %1008, %v927
        %v1010 = vpop.permute.xlu0 %1009
        %1013 = vset.pattern.permute.xlu0 0
        %1014 = vperm.xlu0 %1013, %v928
        %v1015 = vpop.permute.xlu0 %1014
        %1018 = vset.pattern.permute.xlu0 0
        %1019 = vperm.xlu0 %1018, %v929
        %v1020 = vpop.permute.xlu0 %1019
        %1023 = vset.pattern.permute.xlu0 0
        %1024 = vperm.xlu0 %1023, %v930
        %v1025 = vpop.permute.xlu0 %1024
        %1028 = vset.pattern.permute.xlu0 0
        %1029 = vperm.xlu0 %1028, %v931
        %v1030 = vpop.permute.xlu0 %1029
        %1033 = vset.pattern.permute.xlu0 0
        %1034 = vperm.xlu0 %1033, %v932
        %v1035 = vpop.permute.xlu0 %1034
        %1038 = vset.pattern.permute.xlu0 0
        %1039 = vperm.xlu0 %1038, %v933
        %v1040 = vpop.permute.xlu0 %1039
        %1043 = vset.pattern.permute.xlu0 0
        %1044 = vperm.xlu0 %1043, %v934
        %v1045 = vpop.permute.xlu0 %1044
        %1048 = vset.pattern.permute.xlu0 0
        %1049 = vperm.xlu0 %1048, %v935
        %v1050 = vpop.permute.xlu0 %1049
        %1053 = vset.pattern.permute.xlu0 0
        %1054 = vperm.xlu0 %1053, %v936
        %v1055 = vpop.permute.xlu0 %1054
        %1058 = vset.pattern.permute.xlu0 0
        %1059 = vperm.xlu0 %1058, %v937
        %v1060 = vpop.permute.xlu0 %1059
        %1063 = vset.pattern.permute.xlu0 0
        %1064 = vperm.xlu0 %1063, %v938
        %v1065 = vpop.permute.xlu0 %1064
        %1068 = vset.pattern.permute.xlu0 0
        %1069 = vperm.xlu0 %1068, %v939
        %v1070 = vpop.permute.xlu0 %1069
        %1073 = vset.pattern.permute.xlu0 0
        %1074 = vperm.xlu0 %1073, %v940
        %v1075 = vpop.permute.xlu0 %1074
        %1078 = vset.pattern.permute.xlu0 0
        %1079 = vperm.xlu0 %1078, %v941
        %v1080 = vpop.permute.xlu0 %1079
        %1083 = vset.pattern.permute.xlu0 0
        %1084 = vperm.xlu0 %1083, %v942
        %v1085 = vpop.permute.xlu0 %1084
        %1088 = vset.pattern.permute.xlu0 0
        %1089 = vperm.xlu0 %1088, %v943
        %v1090 = vpop.permute.xlu0 %1089
        %1093 = vset.pattern.permute.xlu0 0
        %1094 = vperm.xlu0 %1093, %v944
        %v1095 = vpop.permute.xlu0 %1094
        %1098 = vset.pattern.permute.xlu0 0
        %1099 = vperm.xlu0 %1098, %v945
        %v1100 = vpop.permute.xlu0 %1099
        %1103 = vset.pattern.permute.xlu0 0
        %1104 = vperm.xlu0 %1103, %v946
        %v1105 = vpop.permute.xlu0 %1104
        %v1139 = vunpack.c.l.b16 %v867
        %v1140 = vunpack.c.h.b16 %v867
        %v1141 = vunpack.c.l.b16 %v868
        %v1142 = vunpack.c.h.b16 %v868
        %v1143 = vunpack.c.l.b16 %v869
        %v1144 = vunpack.c.h.b16 %v869
        %v1145 = vunpack.c.l.b16 %v870
        %v1146 = vunpack.c.h.b16 %v870
        %v1147 = vunpack.c.l.b16 %v871
        %v1148 = vunpack.c.h.b16 %v871
        %v1149 = vunpack.c.l.b16 %v872
        %v1150 = vunpack.c.h.b16 %v872
        %v1151 = vunpack.c.l.b16 %v873
        %v1152 = vunpack.c.h.b16 %v873
        %v1153 = vunpack.c.l.b16 %v874
        %v1154 = vunpack.c.h.b16 %v874
        %v1155 = vunpack.c.l.b16 %v875
        %v1156 = vunpack.c.h.b16 %v875
        %v1157 = vunpack.c.l.b16 %v876
        %v1158 = vunpack.c.h.b16 %v876
        %v1159 = vunpack.c.l.b16 %v877
        %v1160 = vunpack.c.h.b16 %v877
        %v1161 = vunpack.c.l.b16 %v878
        %v1162 = vunpack.c.h.b16 %v878
        %v1163 = vunpack.c.l.b16 %v879
        %v1164 = vunpack.c.h.b16 %v879
        %v1165 = vunpack.c.l.b16 %v880
        %v1166 = vunpack.c.h.b16 %v880
        %v1167 = vunpack.c.l.b16 %v881
        %v1168 = vunpack.c.h.b16 %v881
        %v1169 = vunpack.c.l.b16 %v882
        %v1170 = vunpack.c.h.b16 %v882
        %v1171 = vunpack.c.l.b16 %v883
        %v1172 = vunpack.c.h.b16 %v883
        %v1173 = vunpack.c.l.b16 %v884
        %v1174 = vunpack.c.h.b16 %v884
        %v1175 = vunpack.c.l.b16 %v885
        %v1176 = vunpack.c.h.b16 %v885
        %v1177 = vunpack.c.l.b16 %v886
        %v1178 = vunpack.c.h.b16 %v886
        %v1179 = vunpack.c.l.b16 %v887
        %v1180 = vunpack.c.h.b16 %v887
        %v1181 = vunpack.c.l.b16 %v888
        %v1182 = vunpack.c.h.b16 %v888
        %v1183 = vunpack.c.l.b16 %v889
        %v1184 = vunpack.c.h.b16 %v889
        %v1185 = vunpack.c.l.b16 %v890
        %v1186 = vunpack.c.h.b16 %v890
        %v1187 = vunpack.c.l.b16 %v891
        %v1188 = vunpack.c.h.b16 %v891
        %v1189 = vunpack.c.l.b16 %v892
        %v1190 = vunpack.c.h.b16 %v892
        %v1191 = vunpack.c.l.b16 %v893
        %v1192 = vunpack.c.h.b16 %v893
        %v1193 = vunpack.c.l.b16 %v894
        %v1194 = vunpack.c.h.b16 %v894
        %v1195 = vunpack.c.l.b16 %v895
        %v1196 = vunpack.c.h.b16 %v895
        %v1197 = vunpack.c.l.b16 %v896
        %v1198 = vunpack.c.h.b16 %v896
        %v1199 = vunpack.c.l.b16 %v897
        %v1200 = vunpack.c.h.b16 %v897
        %v1201 = vunpack.c.l.b16 %v898
        %v1202 = vunpack.c.h.b16 %v898
        %v1203 = vpack.c.b16 %v1141, %v1139
        %v1204 = vpack.c.b16 %v1142, %v1140
        %v1205 = vpack.c.b16 %v1145, %v1143
        %v1206 = vpack.c.b16 %v1146, %v1144
        %v1207 = vpack.c.b16 %v1149, %v1147
        %v1208 = vpack.c.b16 %v1150, %v1148
        %v1209 = vpack.c.b16 %v1153, %v1151
        %v1210 = vpack.c.b16 %v1154, %v1152
        %v1211 = vpack.c.b16 %v1157, %v1155
        %v1212 = vpack.c.b16 %v1158, %v1156
        %v1213 = vpack.c.b16 %v1161, %v1159
        %v1214 = vpack.c.b16 %v1162, %v1160
        %v1215 = vpack.c.b16 %v1165, %v1163
        %v1216 = vpack.c.b16 %v1166, %v1164
        %v1217 = vpack.c.b16 %v1169, %v1167
        %v1218 = vpack.c.b16 %v1170, %v1168
        %v1219 = vpack.c.b16 %v1173, %v1171
        %v1220 = vpack.c.b16 %v1174, %v1172
        %v1221 = vpack.c.b16 %v1177, %v1175
        %v1222 = vpack.c.b16 %v1178, %v1176
        %v1223 = vpack.c.b16 %v1181, %v1179
        %v1224 = vpack.c.b16 %v1182, %v1180
        %v1225 = vpack.c.b16 %v1185, %v1183
        %v1226 = vpack.c.b16 %v1186, %v1184
        %v1227 = vpack.c.b16 %v1189, %v1187
        %v1228 = vpack.c.b16 %v1190, %v1188
        %v1229 = vpack.c.b16 %v1193, %v1191
        %v1230 = vpack.c.b16 %v1194, %v1192
        %v1231 = vpack.c.b16 %v1197, %v1195
        %v1232 = vpack.c.b16 %v1198, %v1196
        %v1233 = vpack.c.b16 %v1201, %v1199
        %v1234 = vpack.c.b16 %v1202, %v1200
        %1267 = vmatprep.subr.bf16.mxu0 0
        %1268 = vmatpush1.bf16.msra.mxu0 %v906
        %1269 = vmatprep.subr.bf16.mxu0 0
        %1270 = vmatpush1.bf16.msra.mxu0 %v905
        %1271 = vmatprep.subr.bf16.mxu0 0
        %1272 = vmatpush1.bf16.msra.mxu0 %v904
        %1273 = vmatprep.subr.bf16.mxu0 0
        %1274 = vmatpush1.bf16.msra.mxu0 %v903
        %1275 = vmatprep.subr.bf16.mxu0 0
        %1276 = vmatpush1.bf16.msra.mxu0 %v902
        %1277 = vmatprep.subr.bf16.mxu0 0
        %1278 = vmatpush1.bf16.msra.mxu0 %v901
        %1279 = vmatprep.subr.bf16.mxu0 0
        %1280 = vmatpush1.bf16.msra.mxu0 %v900
        %1281 = vmatprep.subr.bf16.mxu0 0
        %1282 = vmatpush1.bf16.msra.mxu0 %v899
        %1283 = vmatprep.subr.bf16.mxu0 0
        %1284 = vmatpush2.bf16.msra.mxu0 %v914
        %1285 = vmatprep.subr.bf16.mxu0 0
        %1286 = vmatpush2.bf16.msra.mxu0 %v913
        %1287 = vmatprep.subr.bf16.mxu0 0
        %1288 = vmatpush2.bf16.msra.mxu0 %v912
        %1289 = vmatprep.subr.bf16.mxu0 0
        %1290 = vmatpush2.bf16.msra.mxu0 %v911
        %1291 = vmatprep.subr.bf16.mxu0 0
        %1292 = vmatpush2.bf16.msra.mxu0 %v910
        %1293 = vmatprep.subr.bf16.mxu0 0
        %1294 = vmatpush2.bf16.msra.mxu0 %v909
        %1295 = vmatprep.subr.bf16.mxu0 0
        %1296 = vmatpush2.bf16.msra.mxu0 %v908
        %1297 = vmatprep.subr.bf16.mxu0 0
        %1298 = vmatpush2.bf16.msra.mxu0 %v907
        %1299 = vmatprep.mubr.bf16.mxu0 %v1204
        %1300 = vmatmul.mubr.bf16.gmra.mxu0 %v1203
        %v1301 = vpop.f32.mrf.mxu0
        %v1302 = vadd.f32 %v950, %v1301
        %v1303 = vpop.f32.mrf.mxu0
        %v1304 = vpop.f32.mrf.mxu0
        %v1305 = vadd.f32 %v955, %v1304
        %v1306 = vpop.f32.mrf.mxu0
        %1307 = vmatprep.mubr.bf16.mxu0 %v1206
        %1308 = vmatmul.mubr.bf16.gmra.mxu0 %v1205
        %v1309 = vpop.f32.mrf.mxu0
        %v1310 = vadd.f32 %v960, %v1309
        %v1311 = vpop.f32.mrf.mxu0
        %v1312 = vpop.f32.mrf.mxu0
        %v1313 = vadd.f32 %v965, %v1312
        %v1314 = vpop.f32.mrf.mxu0
        %1315 = vmatprep.mubr.bf16.mxu0 %v1208
        %1316 = vmatmul.mubr.bf16.gmra.mxu0 %v1207
        %v1317 = vpop.f32.mrf.mxu0
        %v1318 = vadd.f32 %v970, %v1317
        %v1319 = vpop.f32.mrf.mxu0
        %v1320 = vpop.f32.mrf.mxu0
        %v1321 = vadd.f32 %v975, %v1320
        %v1322 = vpop.f32.mrf.mxu0
        %1323 = vmatprep.mubr.bf16.mxu0 %v1210
        %1324 = vmatmul.mubr.bf16.gmra.mxu0 %v1209
        %v1325 = vpop.f32.mrf.mxu0
        %v1326 = vadd.f32 %v980, %v1325
        %v1327 = vpop.f32.mrf.mxu0
        %v1328 = vpop.f32.mrf.mxu0
        %v1329 = vadd.f32 %v985, %v1328
        %v1330 = vpop.f32.mrf.mxu0
        %1331 = vmatprep.mubr.bf16.mxu0 %v1212
        %1332 = vmatmul.mubr.bf16.gmra.mxu0 %v1211
        %v1333 = vpop.f32.mrf.mxu0
        %v1334 = vadd.f32 %v990, %v1333
        %v1335 = vpop.f32.mrf.mxu0
        %v1336 = vpop.f32.mrf.mxu0
        %v1337 = vadd.f32 %v995, %v1336
        %v1338 = vpop.f32.mrf.mxu0
        %1339 = vmatprep.mubr.bf16.mxu0 %v1214
        %1340 = vmatmul.mubr.bf16.gmra.mxu0 %v1213
        %v1341 = vpop.f32.mrf.mxu0
        %v1342 = vadd.f32 %v1000, %v1341
        %v1343 = vpop.f32.mrf.mxu0
        %v1344 = vpop.f32.mrf.mxu0
        %v1345 = vadd.f32 %v1005, %v1344
        %v1346 = vpop.f32.mrf.mxu0
        %1347 = vmatprep.mubr.bf16.mxu0 %v1216
        %1348 = vmatmul.mubr.bf16.gmra.mxu0 %v1215
        %v1349 = vpop.f32.mrf.mxu0
        %v1350 = vadd.f32 %v1010, %v1349
        %v1351 = vpop.f32.mrf.mxu0
        %v1352 = vpop.f32.mrf.mxu0
        %v1353 = vadd.f32 %v1015, %v1352
        %v1354 = vpop.f32.mrf.mxu0
        %1355 = vmatprep.mubr.bf16.mxu0 %v1218
        %1356 = vmatmul.mubr.bf16.gmra.mxu0 %v1217
        %v1357 = vpop.f32.mrf.mxu0
        %v1358 = vadd.f32 %v1020, %v1357
        %v1359 = vpop.f32.mrf.mxu0
        %v1360 = vpop.f32.mrf.mxu0
        %v1361 = vadd.f32 %v1025, %v1360
        %v1362 = vpop.f32.mrf.mxu0
        %1363 = vmatprep.mubr.bf16.mxu0 %v1220
        %1364 = vmatmul.mubr.bf16.gmra.mxu0 %v1219
        %v1365 = vpop.f32.mrf.mxu0
        %v1366 = vadd.f32 %v1030, %v1365
        %v1367 = vpop.f32.mrf.mxu0
        %v1368 = vpop.f32.mrf.mxu0
        %v1369 = vadd.f32 %v1035, %v1368
        %v1370 = vpop.f32.mrf.mxu0
        %1371 = vmatprep.mubr.bf16.mxu0 %v1222
        %1372 = vmatmul.mubr.bf16.gmra.mxu0 %v1221
        %v1373 = vpop.f32.mrf.mxu0
        %v1374 = vadd.f32 %v1040, %v1373
        %v1375 = vpop.f32.mrf.mxu0
        %v1376 = vpop.f32.mrf.mxu0
        %v1377 = vadd.f32 %v1045, %v1376
        %v1378 = vpop.f32.mrf.mxu0
        %1379 = vmatprep.mubr.bf16.mxu0 %v1224
        %1380 = vmatmul.mubr.bf16.gmra.mxu0 %v1223
        %v1381 = vpop.f32.mrf.mxu0
        %v1382 = vadd.f32 %v1050, %v1381
        %v1383 = vpop.f32.mrf.mxu0
        %v1384 = vpop.f32.mrf.mxu0
        %v1385 = vadd.f32 %v1055, %v1384
        %v1386 = vpop.f32.mrf.mxu0
        %1387 = vmatprep.mubr.bf16.mxu0 %v1226
        %1388 = vmatmul.mubr.bf16.gmra.mxu0 %v1225
        %v1389 = vpop.f32.mrf.mxu0
        %v1390 = vadd.f32 %v1060, %v1389
        %v1391 = vpop.f32.mrf.mxu0
        %v1392 = vpop.f32.mrf.mxu0
        %v1393 = vadd.f32 %v1065, %v1392
        %v1394 = vpop.f32.mrf.mxu0
        %1395 = vmatprep.mubr.bf16.mxu0 %v1228
        %1396 = vmatmul.mubr.bf16.gmra.mxu0 %v1227
        %v1397 = vpop.f32.mrf.mxu0
        %v1398 = vadd.f32 %v1070, %v1397
        %v1399 = vpop.f32.mrf.mxu0
        %v1400 = vpop.f32.mrf.mxu0
        %v1401 = vadd.f32 %v1075, %v1400
        %v1402 = vpop.f32.mrf.mxu0
        %1403 = vmatprep.mubr.bf16.mxu0 %v1230
        %1404 = vmatmul.mubr.bf16.gmra.mxu0 %v1229
        %v1405 = vpop.f32.mrf.mxu0
        %v1406 = vadd.f32 %v1080, %v1405
        %v1407 = vpop.f32.mrf.mxu0
        %v1408 = vpop.f32.mrf.mxu0
        %v1409 = vadd.f32 %v1085, %v1408
        %v1410 = vpop.f32.mrf.mxu0
        %1411 = vmatprep.mubr.bf16.mxu0 %v1232
        %1412 = vmatmul.mubr.bf16.gmra.mxu0 %v1231
        %v1413 = vpop.f32.mrf.mxu0
        %v1414 = vadd.f32 %v1090, %v1413
        %v1415 = vpop.f32.mrf.mxu0
        %v1416 = vpop.f32.mrf.mxu0
        %v1417 = vadd.f32 %v1095, %v1416
        %v1418 = vpop.f32.mrf.mxu0
        %1419 = vmatprep.mubr.bf16.mxu0 %v1234
        %1420 = vmatmul.mubr.bf16.gmra.mxu0 %v1233
        %v1421 = vpop.f32.mrf.mxu0
        %v1422 = vadd.f32 %v1100, %v1421
        %v1423 = vpop.f32.mrf.mxu0
        %v1424 = vpop.f32.mrf.mxu0
        %v1425 = vadd.f32 %v1105, %v1424
        %v1426 = vpop.f32.mrf.mxu0
        %1427 = vdwg.mxu0
        %v1428 = vmax.f32 %v1302, 0.0
        %v1429 = vmax.f32 %v1305, 0.0
        %v1430 = vmax.f32 %v1310, 0.0
        %v1431 = vmax.f32 %v1313, 0.0
        %v1432 = vmax.f32 %v1318, 0.0
        %v1433 = vmax.f32 %v1321, 0.0
        %v1434 = vmax.f32 %v1326, 0.0
        %v1435 = vmax.f32 %v1329, 0.0
        %v1436 = vmax.f32 %v1334, 0.0
        %v1437 = vmax.f32 %v1337, 0.0
        %v1438 = vmax.f32 %v1342, 0.0
        %v1439 = vmax.f32 %v1345, 0.0
        %v1440 = vmax.f32 %v1350, 0.0
        %v1441 = vmax.f32 %v1353, 0.0
        %v1442 = vmax.f32 %v1358, 0.0
        %v1443 = vmax.f32 %v1361, 0.0
        %v1444 = vmax.f32 %v1366, 0.0
        %v1445 = vmax.f32 %v1369, 0.0
        %v1446 = vmax.f32 %v1374, 0.0
        %v1447 = vmax.f32 %v1377, 0.0
        %v1448 = vmax.f32 %v1382, 0.0
        %v1449 = vmax.f32 %v1385, 0.0
        %v1450 = vmax.f32 %v1390, 0.0
        %v1451 = vmax.f32 %v1393, 0.0
        %v1452 = vmax.f32 %v1398, 0.0
        %v1453 = vmax.f32 %v1401, 0.0
        %v1454 = vmax.f32 %v1406, 0.0
        %v1455 = vmax.f32 %v1409, 0.0
        %v1456 = vmax.f32 %v1414, 0.0
        %v1457 = vmax.f32 %v1417, 0.0
        %v1458 = vmax.f32 %v1422, 0.0
        %v1459 = vmax.f32 %v1425, 0.0
        %v1460 = vld [vmem:[%s5] sm:$0xff]
        %v1461 = vld [vmem:[%s5 + $0x8] sm:$0xff]
        %v1462 = vld [vmem:[%s5 + $0x10] sm:$0xff]
        %v1463 = vld [vmem:[%s5 + $0x18] sm:$0xff]
        %v1464 = vld [vmem:[%s5 + $0x20] sm:$0xff]
        %v1465 = vld [vmem:[%s5 + $0x28] sm:$0xff]
        %v1466 = vld [vmem:[%s5 + $0x30] sm:$0xff]
        %v1467 = vld [vmem:[%s5 + $0x38] sm:$0xff]
        %v1468 = vld [vmem:[%s5 + $0x40] sm:$0xff]
        %v1469 = vld [vmem:[%s5 + $0x48] sm:$0xff]
        %v1470 = vld [vmem:[%s5 + $0x50] sm:$0xff]
        %v1471 = vld [vmem:[%s5 + $0x58] sm:$0xff]
        %v1472 = vld [vmem:[%s5 + $0x60] sm:$0xff]
        %v1473 = vld [vmem:[%s5 + $0x68] sm:$0xff]
        %v1474 = vld [vmem:[%s5 + $0x70] sm:$0xff]
        %v1475 = vld [vmem:[%s5 + $0x78] sm:$0xff]
        %v1476 = vld [vmem:[%s5 + $0x80] sm:$0xff]
        %v1477 = vld [vmem:[%s5 + $0x88] sm:$0xff]
        %v1478 = vld [vmem:[%s5 + $0x90] sm:$0xff]
        %v1479 = vld [vmem:[%s5 + $0x98] sm:$0xff]
        %v1480 = vld [vmem:[%s5 + $0xa0] sm:$0xff]
        %v1481 = vld [vmem:[%s5 + $0xa8] sm:$0xff]
        %v1482 = vld [vmem:[%s5 + $0xb0] sm:$0xff]
        %v1483 = vld [vmem:[%s5 + $0xb8] sm:$0xff]
        %v1484 = vld [vmem:[%s5 + $0xc0] sm:$0xff]
        %v1485 = vld [vmem:[%s5 + $0xc8] sm:$0xff]
        %v1486 = vld [vmem:[%s5 + $0xd0] sm:$0xff]
        %v1487 = vld [vmem:[%s5 + $0xd8] sm:$0xff]
        %v1488 = vld [vmem:[%s5 + $0xe0] sm:$0xff]
        %v1489 = vld [vmem:[%s5 + $0xe8] sm:$0xff]
        %v1490 = vld [vmem:[%s5 + $0xf0] sm:$0xff]
        %v1491 = vld [vmem:[%s5 + $0xf8] sm:$0xff]
        %1493 = vset.pattern.permute.xlu0 0
        %1494 = vperm.xlu0 %1493, %v1460
        %v1495 = vpop.permute.xlu0 %1494
        %1498 = vset.pattern.permute.xlu0 0
        %1499 = vperm.xlu0 %1498, %v1461
        %v1500 = vpop.permute.xlu0 %1499
        %1503 = vset.pattern.permute.xlu0 0
        %1504 = vperm.xlu0 %1503, %v1462
        %v1505 = vpop.permute.xlu0 %1504
        %1508 = vset.pattern.permute.xlu0 0
        %1509 = vperm.xlu0 %1508, %v1463
        %v1510 = vpop.permute.xlu0 %1509
        %1513 = vset.pattern.permute.xlu0 0
        %1514 = vperm.xlu0 %1513, %v1464
        %v1515 = vpop.permute.xlu0 %1514
        %1518 = vset.pattern.permute.xlu0 0
        %1519 = vperm.xlu0 %1518, %v1465
        %v1520 = vpop.permute.xlu0 %1519
        %1523 = vset.pattern.permute.xlu0 0
        %1524 = vperm.xlu0 %1523, %v1466
        %v1525 = vpop.permute.xlu0 %1524
        %1528 = vset.pattern.permute.xlu0 0
        %1529 = vperm.xlu0 %1528, %v1467
        %v1530 = vpop.permute.xlu0 %1529
        %1533 = vset.pattern.permute.xlu0 0
        %1534 = vperm.xlu0 %1533, %v1468
        %v1535 = vpop.permute.xlu0 %1534
        %1538 = vset.pattern.permute.xlu0 0
        %1539 = vperm.xlu0 %1538, %v1469
        %v1540 = vpop.permute.xlu0 %1539
        %1543 = vset.pattern.permute.xlu0 0
        %1544 = vperm.xlu0 %1543, %v1470
        %v1545 = vpop.permute.xlu0 %1544
        %1548 = vset.pattern.permute.xlu0 0
        %1549 = vperm.xlu0 %1548, %v1471
        %v1550 = vpop.permute.xlu0 %1549
        %1553 = vset.pattern.permute.xlu0 0
        %1554 = vperm.xlu0 %1553, %v1472
        %v1555 = vpop.permute.xlu0 %1554
        %1558 = vset.pattern.permute.xlu0 0
        %1559 = vperm.xlu0 %1558, %v1473
        %v1560 = vpop.permute.xlu0 %1559
        %1563 = vset.pattern.permute.xlu0 0
        %1564 = vperm.xlu0 %1563, %v1474
        %v1565 = vpop.permute.xlu0 %1564
        %1568 = vset.pattern.permute.xlu0 0
        %1569 = vperm.xlu0 %1568, %v1475
        %v1570 = vpop.permute.xlu0 %1569
        %1573 = vset.pattern.permute.xlu0 0
        %1574 = vperm.xlu0 %1573, %v1476
        %v1575 = vpop.permute.xlu0 %1574
        %1578 = vset.pattern.permute.xlu0 0
        %1579 = vperm.xlu0 %1578, %v1477
        %v1580 = vpop.permute.xlu0 %1579
        %1583 = vset.pattern.permute.xlu0 0
        %1584 = vperm.xlu0 %1583, %v1478
        %v1585 = vpop.permute.xlu0 %1584
        %1588 = vset.pattern.permute.xlu0 0
        %1589 = vperm.xlu0 %1588, %v1479
        %v1590 = vpop.permute.xlu0 %1589
        %1593 = vset.pattern.permute.xlu0 0
        %1594 = vperm.xlu0 %1593, %v1480
        %v1595 = vpop.permute.xlu0 %1594
        %1598 = vset.pattern.permute.xlu0 0
        %1599 = vperm.xlu0 %1598, %v1481
        %v1600 = vpop.permute.xlu0 %1599
        %1603 = vset.pattern.permute.xlu0 0
        %1604 = vperm.xlu0 %1603, %v1482
        %v1605 = vpop.permute.xlu0 %1604
        %1608 = vset.pattern.permute.xlu0 0
        %1609 = vperm.xlu0 %1608, %v1483
        %v1610 = vpop.permute.xlu0 %1609
        %1613 = vset.pattern.permute.xlu0 0
        %1614 = vperm.xlu0 %1613, %v1484
        %v1615 = vpop.permute.xlu0 %1614
        %1618 = vset.pattern.permute.xlu0 0
        %1619 = vperm.xlu0 %1618, %v1485
        %v1620 = vpop.permute.xlu0 %1619
        %1623 = vset.pattern.permute.xlu0 0
        %1624 = vperm.xlu0 %1623, %v1486
        %v1625 = vpop.permute.xlu0 %1624
        %1628 = vset.pattern.permute.xlu0 0
        %1629 = vperm.xlu0 %1628, %v1487
        %v1630 = vpop.permute.xlu0 %1629
        %1633 = vset.pattern.permute.xlu0 0
        %1634 = vperm.xlu0 %1633, %v1488
        %v1635 = vpop.permute.xlu0 %1634
        %1638 = vset.pattern.permute.xlu0 0
        %1639 = vperm.xlu0 %1638, %v1489
        %v1640 = vpop.permute.xlu0 %1639
        %1643 = vset.pattern.permute.xlu0 0
        %1644 = vperm.xlu0 %1643, %v1490
        %v1645 = vpop.permute.xlu0 %1644
        %1648 = vset.pattern.permute.xlu0 0
        %1649 = vperm.xlu0 %1648, %v1491
        %v1650 = vpop.permute.xlu0 %1649
        %v1652 = vmul.f32 %v1428, %v1495
        %v1653 = vmul.f32 %v1429, %v1500
        %v1654 = vmul.f32 %v1430, %v1505
        %v1655 = vmul.f32 %v1431, %v1510
        %v1656 = vmul.f32 %v1432, %v1515
        %v1657 = vmul.f32 %v1433, %v1520
        %v1658 = vmul.f32 %v1434, %v1525
        %v1659 = vmul.f32 %v1435, %v1530
        %v1660 = vmul.f32 %v1436, %v1535
        %v1661 = vmul.f32 %v1437, %v1540
        %v1662 = vmul.f32 %v1438, %v1545
        %v1663 = vmul.f32 %v1439, %v1550
        %v1664 = vmul.f32 %v1440, %v1555
        %v1665 = vmul.f32 %v1441, %v1560
        %v1666 = vmul.f32 %v1442, %v1565
        %v1667 = vmul.f32 %v1443, %v1570
        %v1668 = vmul.f32 %v1444, %v1575
        %v1669 = vmul.f32 %v1445, %v1580
        %v1670 = vmul.f32 %v1446, %v1585
        %v1671 = vmul.f32 %v1447, %v1590
        %v1672 = vmul.f32 %v1448, %v1595
        %v1673 = vmul.f32 %v1449, %v1600
        %v1674 = vmul.f32 %v1450, %v1605
        %v1675 = vmul.f32 %v1451, %v1610
        %v1676 = vmul.f32 %v1452, %v1615
        %v1677 = vmul.f32 %v1453, %v1620
        %v1678 = vmul.f32 %v1454, %v1625
        %v1679 = vmul.f32 %v1455, %v1630
        %v1680 = vmul.f32 %v1456, %v1635
        %v1681 = vmul.f32 %v1457, %v1640
        %v1682 = vmul.f32 %v1458, %v1645
        %v1683 = vmul.f32 %v1459, %v1650
        %v1684 = vadd.f32 %v1652, %v1653
        %v1685 = vadd.f32 %v1684, %v1654
        %v1686 = vadd.f32 %v1685, %v1655
        %v1687 = vadd.f32 %v1686, %v1656
        %v1688 = vadd.f32 %v1687, %v1657
        %v1689 = vadd.f32 %v1688, %v1658
        %v1690 = vadd.f32 %v1689, %v1659
        %v1691 = vadd.f32 %v1690, %v1660
        %v1692 = vadd.f32 %v1691, %v1661
        %v1693 = vadd.f32 %v1692, %v1662
        %v1694 = vadd.f32 %v1693, %v1663
        %v1695 = vadd.f32 %v1694, %v1664
        %v1696 = vadd.f32 %v1695, %v1665
        %v1697 = vadd.f32 %v1696, %v1666
        %v1698 = vadd.f32 %v1697, %v1667
        %v1699 = vadd.f32 %v1698, %v1668
        %v1700 = vadd.f32 %v1699, %v1669
        %v1701 = vadd.f32 %v1700, %v1670
        %v1702 = vadd.f32 %v1701, %v1671
        %v1703 = vadd.f32 %v1702, %v1672
        %v1704 = vadd.f32 %v1703, %v1673
        %v1705 = vadd.f32 %v1704, %v1674
        %v1706 = vadd.f32 %v1705, %v1675
        %v1707 = vadd.f32 %v1706, %v1676
        %v1708 = vadd.f32 %v1707, %v1677
        %v1709 = vadd.f32 %v1708, %v1678
        %v1710 = vadd.f32 %v1709, %v1679
        %v1711 = vadd.f32 %v1710, %v1680
        %v1712 = vadd.f32 %v1711, %v1681
        %v1713 = vadd.f32 %v1712, %v1682
        %v1714 = vadd.f32 %v1713, %v1683
        %v1715 = vrot.slane %v1714, 4
        %v1716 = vadd.f32 %v1714, %v1715
        %v1717 = vrot.slane %v1716, 2
        %v1718 = vadd.f32 %v1716, %v1717
        %v1719 = vrot.slane %v1718, 1
        %v1720 = vadd.f32 %v1718, %v1719
        %1721 = vst [vmem:[%s303] sm:$0x1] %v1720
        %s1722 = sand.u32 %s159, 1
        %s1723 = scalar_lea.sflag [#allocation4], %s1722
        %s1724 = sand.u32 %s159, 1
        %s1725 = scalar_lea.vmem [#allocation3], %s1724
        // Predicated region
        $region86: #{tpu_custom_call.1} parent=80 // pred_check
          %p1726 = pneg %p169
        $region87: #{tpu_custom_call.1} parent=80 // pred_check_branch
          %1728 = sbr.rel (%p1726) target = $region89
        $region88: #{tpu_custom_call.1} parent=80 // pred_region
          %s1730 = ssub.s32 16, 16
          %1731 = vsyncadd %s1723, %s1730
          %s1732 = smul.addr %s20, 16
          %s1733 = scalar_lea.hbm %s6, %s1732
          %s1735 = sshll.u32 %s1725, 4
          %s1736 = int_to_ptr.vmem [resolvable:$true] %s1735
          %1738 = dma.vmem_to_hbm [thread:$0]  %s1736, 16, %s1733, %s1723
        $region89: #{tpu_custom_call.1} parent=80 // pred_fallthru
          _
      $region81: #{tpu_custom_call.1} parent=5 // pred_fallthru
        _
      %p1739 = scmp.le.s32.totalorder 2, %s15
      // Predicated region
      $region90: #{tpu_custom_call.1} parent=5 // pred_check
        %p1740 = pneg %p1739
      $region91: #{tpu_custom_call.1} parent=5 // pred_check_branch
        %1742 = sbr.rel (%p1740) target = $region93
      $region92: #{tpu_custom_call.1} parent=5 // pred_region
        %s1743 = ssub.s32 %s15, 2
        // Predicated region
        $region94: #{tpu_custom_call.1} parent=92 // pred_check
          %p1744 = pneg %p175
        $region95: #{tpu_custom_call.1} parent=92 // pred_check_branch
          %1746 = sbr.rel (%p1744) target = $region97
        $region96: #{tpu_custom_call.1} parent=92 // pred_region
          %s1747 = sand.u32 %s160, 1
          %s1748 = scalar_lea.sflag [#allocation4], %s1747
          %s1749 = sand.u32 %s160, 1
          %s1750 = scalar_lea.vmem [#allocation3], %s1749
          %1751 = dma.done %s1748, 16
        $region97: #{tpu_custom_call.1} parent=92 // pred_fallthru
          _
      $region93: #{tpu_custom_call.1} parent=5 // pred_fallthru
        _
    $region6: #{tpu_custom_call.1} parent=1 // loop_footer
      %s19 = sadd.s32 1, %s15
    $region7: #{tpu_custom_call.1} parent=1 // loop_footer_branch
      %14 = sbr.rel target = $region3
    $region8: #{tpu_custom_call.1} parent=1 // loop_exit
      _
    %1752 = vsyncpa [#allocation4], 1
    %s1753 = scalar_lea.sflag [#allocation4], 1
    %1754 = vsyncpa %s1753, 1

</llo_original>
